<compile_context>
chip_gen: v5e
topology: v5e:2x2
jax: 0.10.0
libtpu: 0.0.40
codegen_flags: <defaults>
</compile_context>

<pallas_src>
import functools

import jax
import jax.numpy as jnp
from jax.experimental import pallas as pl
from jax.experimental.pallas import tpu as pltpu

LANE = 128


def _round_up(x, m):
    return ((x + m - 1) // m) * m


# ----------------------------------------------------------------------------
# Kernel 1: tiled fused MessagePassing layer (+ ReLU)
#   out[i] = X[i] @ W1_aug + scale[i] * ((A @ X)[i] @ W2_aug)
# which (with the ones/bias augmentation) equals fc1(X) + A_eff @ fc2(X).
# ----------------------------------------------------------------------------
def _mp_kernel(x_row_ref, x_col_ref, a_ref, scale_ref, w1_ref, w2_ref,
               o_ref, acc_ref, *, apply_relu):
    k = pl.program_id(1)

    @pl.when(k == 0)
    def _init():
        acc_ref[...] = jnp.zeros_like(acc_ref)

    # Accumulate (A @ X) over column blocks (reassociated aggregation).
    acc_ref[...] += jnp.dot(a_ref[...], x_col_ref[...],
                            preferred_element_type=jnp.float32)

    @pl.when(k == pl.num_programs(1) - 1)
    def _finalize():
        z1 = jnp.dot(x_row_ref[...], w1_ref[...],
                     preferred_element_type=jnp.float32)
        agg = jnp.dot(acc_ref[...].astype(w2_ref.dtype), w2_ref[...],
                      preferred_element_type=jnp.float32)
        out = z1 + scale_ref[...] * agg   # scale = 1 ('sum') or 1/deg ('mean')
        if apply_relu:
            out = jnp.maximum(out, 0.0)
        o_ref[...] = out.astype(o_ref.dtype)


def message_passing(Xp, Ap, scale, W1_aug, W2_aug, *, apply_relu, block=256):
    n_pad, d_in = Xp.shape
    d_out = W1_aug.shape[1]
    grid = (n_pad // block, n_pad // block)
    return pl.pallas_call(
        functools.partial(_mp_kernel, apply_relu=apply_relu),
        out_shape=jax.ShapeDtypeStruct((n_pad, d_out), jnp.bfloat16),
        grid_spec=pltpu.PrefetchScalarGridSpec(
            num_scalar_prefetch=0,
            grid=grid,
            in_specs=[
                pl.BlockSpec((block, d_in), lambda i, k: (i, 0)),    # X rows (fc1 term)
                pl.BlockSpec((block, d_in), lambda i, k: (k, 0)),    # X rows for A cols
                pl.BlockSpec((block, block), lambda i, k: (i, k)),   # A tile
                pl.BlockSpec((block, 1), lambda i, k: (i, 0)),       # per-row scale
                pl.BlockSpec((d_in, d_out), lambda i, k: (0, 0)),    # fc1 weight (aug)
                pl.BlockSpec((d_in, d_out), lambda i, k: (0, 0)),    # fc2 weight (aug)
            ],
            out_specs=pl.BlockSpec((block, d_out), lambda i, k: (i, 0)),
            scratch_shapes=[pltpu.VMEM((block, d_in), jnp.float32)],
        ),
        compiler_params=pltpu.CompilerParams(
            dimension_semantics=("parallel", "arbitrary")),
    )(Xp, Xp, Ap, scale, W1_aug, W2_aug)


# ----------------------------------------------------------------------------
# Kernel 2: graph readout (one-hot built in-kernel from idx) + final Linear
# ----------------------------------------------------------------------------
def _readout_kernel(idx_ref, z_ref, invc_ref, wf_ref, bf_ref, o_ref, acc_ref,
                    *, g_pad):
    n = pl.program_id(0)

    @pl.when(n == 0)
    def _init():
        acc_ref[...] = jnp.zeros_like(acc_ref)

    idx = idx_ref[...]                                            # (1, tk) int32
    gids = jax.lax.broadcasted_iota(jnp.int32, (g_pad, idx.shape[1]), 0)
    onehot = (idx == gids).astype(z_ref.dtype)                    # (g_pad, tk)
    acc_ref[...] += jnp.dot(onehot, z_ref[...],
                            preferred_element_type=jnp.float32)

    @pl.when(n == pl.num_programs(0) - 1)
    def _finalize():
        zg = acc_ref[...] * invc_ref[...]       # 1 ('sum') or 1/count ('mean')
        out = jnp.dot(zg.astype(wf_ref.dtype), wf_ref[...],
                      preferred_element_type=jnp.float32) + bf_ref[...]
        o_ref[...] = out.astype(o_ref.dtype)


def readout_fc(idx_row, Z1p, inv_count, Wf_aug, bf_pad, *, g_pad, block=256):
    n_pad, d_h = Z1p.shape
    d_o = Wf_aug.shape[1]
    grid = (n_pad // block,)
    return pl.pallas_call(
        functools.partial(_readout_kernel, g_pad=g_pad),
        out_shape=jax.ShapeDtypeStruct((g_pad, d_o), jnp.float32),
        grid_spec=pltpu.PrefetchScalarGridSpec(
            num_scalar_prefetch=0,
            grid=grid,
            in_specs=[
                pl.BlockSpec((1, block), lambda n: (0, n)),     # graph id per node
                pl.BlockSpec((block, d_h), lambda n: (n, 0)),   # node features
                pl.BlockSpec((g_pad, 1), lambda n: (0, 0)),     # 1/count per graph
                pl.BlockSpec((d_h, d_o), lambda n: (0, 0)),     # final fc weight
                pl.BlockSpec((1, d_o), lambda n: (0, 0)),       # final fc bias
            ],
            out_specs=pl.BlockSpec((g_pad, d_o), lambda n: (0, 0)),
            scratch_shapes=[pltpu.VMEM((g_pad, d_h), jnp.float32)],
        ),
        compiler_params=pltpu.CompilerParams(
            dimension_semantics=("arbitrary",)),
    )(idx_row, Z1p, inv_count, Wf_aug, bf_pad)


# ----------------------------------------------------------------------------
# Glue: padding / augmentation + full forward
# ----------------------------------------------------------------------------
def _aug_weight(W_t, b, bias_row, dp_in, dp_out, ones_col=None):
    """Zero-padded [in,out] weight with bias folded into row `bias_row`.
    If ones_col is given, a 1 at (bias_row, ones_col) propagates the input
    ones-column into the output so the next layer's bias also rides the MXU."""
    in_dim, out_dim = W_t.shape
    Wa = jnp.zeros((dp_in, dp_out), jnp.float32)
    Wa = Wa.at[:in_dim, :out_dim].set(W_t)
    Wa = Wa.at[bias_row, :out_dim].set(jnp.reshape(b, (-1,)))
    if ones_col is not None:
        Wa = Wa.at[bias_row, ones_col].set(1.0)
    return Wa.astype(jnp.bfloat16)


def gnn_forward(X, A, idx, params, *, num_graphs,
                neighbor_aggr="sum", readout="sum", block=256):
    N, d_in = X.shape
    H = params["W1a"].shape[1]
    O = params["Wf"].shape[1]
    f32 = jnp.float32

    dp_in = _round_up(d_in + 1, LANE)       # +1 -> room for ones/bias column
    dp_h = _round_up(H + 1, LANE)
    dp_o = _round_up(O, LANE)
    n_pad = _round_up(N, block)
    g_pad = _round_up(max(num_graphs, 8), 8)

    # Node features augmented with a ones column (real rows only), zero-padded.
    Xp = jnp.zeros((n_pad, dp_in), f32)
    Xp = Xp.at[:N, :d_in].set(X)
    Xp = Xp.at[:N, d_in].set(1.0)
    Xp = Xp.astype(jnp.bfloat16)

    # Raw 0/1 adjacency (exact in bf16); D^-1 A is never materialized.
    Ap = jnp.zeros((n_pad, n_pad), f32).at[:N, :N].set(A).astype(jnp.bfloat16)

    if neighbor_aggr == "sum":
        scale = jnp.ones((n_pad, 1), f32)
    elif neighbor_aggr == "mean":
        # reference: D = diag(A.sum(0)); out = Z1 + D^-1 A Z2  (row i / colsum_i)
        col_sum = jnp.zeros((n_pad,), f32).at[:N].set(jnp.sum(A, axis=0))
        scale = jnp.where(col_sum > 0.0, 1.0 / col_sum, 0.0)[:, None]
    else:
        raise ValueError(neighbor_aggr)

    # Augmented / padded weights (bias folded in; ones column propagated).
    W1a = _aug_weight(params["W1a"], params["b1a"], d_in, dp_in, dp_h, ones_col=H)
    W1b = _aug_weight(params["W1b"], params["b1b"], d_in, dp_in, dp_h)
    W2a = _aug_weight(params["W2a"], params["b2a"], H, dp_h, dp_h, ones_col=H)
    W2b = _aug_weight(params["W2b"], params["b2b"], H, dp_h, dp_h)
    Wf = jnp.zeros((dp_h, dp_o), f32).at[:H, :O].set(params["Wf"]).astype(jnp.bfloat16)
    bf = jnp.zeros((1, dp_o), f32).at[0, :O].set(jnp.reshape(params["bf"], (-1,)))

    # mp1 -> relu -> dropout (identity in eval mode)
    Z0 = message_passing(Xp, Ap, scale, W1a, W1b, apply_relu=True, block=block)
    # mp2 -> relu
    Z1 = message_passing(Z0, Ap, scale, W2a, W2b, apply_relu=True, block=block)

    # Readout: per-node graph ids (padded nodes -> -1, matches no graph).
    idx_row = jnp.full((1, n_pad), -1, jnp.int32).at[0, :N].set(idx.astype(jnp.int32))
    if readout == "sum":
        inv_count = jnp.ones((g_pad, 1), f32)
    elif readout == "mean":
        counts = jnp.zeros((g_pad,), f32).at[idx].add(1.0)
        inv_count = jnp.where(counts > 0.0, 1.0 / counts, 0.0)[:, None]
    else:
        raise ValueError(readout)

    out = readout_fc(idx_row, Z1, inv_count, Wf, bf, g_pad=g_pad, block=block)
    return out[:num_graphs, :O]


# ----------------------------------------------------------------------------
# Pure-JAX reference (f32) for correctness checking
# ----------------------------------------------------------------------------
def gnn_reference(X, A, idx, params, *, num_graphs, neighbor_aggr, readout):
    def mp(Xl, W1_t, b1, W2_t, b2):
        Z1 = Xl @ W1_t + b1
        Z2 = Xl @ W2_t + b2
        if neighbor_aggr == "sum":
            return Z1 + A @ Z2
        col = jnp.sum(A, axis=0)
        return Z1 + (A / col[:, None]) @ Z2

    Z0 = jax.nn.relu(mp(X, params["W1a"], params["b1a"], params["W1b"], params["b1b"]))
    Z1 = jax.nn.relu(mp(Z0, params["W2a"], params["b2a"], params["W2b"], params["b2b"]))
    M = (idx[None, :] == jnp.arange(num_graphs)[:, None]).astype(jnp.float32)
    ZG = M @ Z1
    if readout == "mean":
        ZG = ZG / jnp.maximum(jnp.sum(M, axis=1, keepdims=True), 1.0)
    return ZG @ params["Wf"] + params["bf"]


# ----------------------------------------------------------------------------
# Deterministic parameter init (PyTorch nn.Linear-style uniform(-k, k))
# ----------------------------------------------------------------------------
def init_params(key, input_dim, hidden_dim, output_dim):
    def linear(key, fan_in, fan_out):
        k1, k2 = jax.random.split(key)
        bound = 1.0 / jnp.sqrt(fan_in)
        W_t = jax.random.uniform(k1, (fan_in, fan_out), jnp.float32, -bound, bound)
        b = jax.random.uniform(k2, (1, fan_out), jnp.float32, -bound, bound)
        return W_t, b

    ks = jax.random.split(key, 5)
    W1a, b1a = linear(ks[0], input_dim, hidden_dim)   # mp1.fc1
    W1b, b1b = linear(ks[1], input_dim, hidden_dim)   # mp1.fc2
    W2a, b2a = linear(ks[2], hidden_dim, hidden_dim)  # mp2.fc1
    W2b, b2b = linear(ks[3], hidden_dim, hidden_dim)  # mp2.fc2
    Wf, bf = linear(ks[4], hidden_dim, output_dim)    # fc
    return dict(W1a=W1a, b1a=b1a, W1b=W1b, b1b=b1b,
                W2a=W2a, b2a=b2a, W2b=W2b, b2b=b2b,
                Wf=Wf, bf=bf)


if __name__ == "__main__":
    key = jax.random.PRNGKey(0)
    k_x, k_a, k_p = jax.random.split(key, 3)

    N = 16          # total nodes across all graphs
    input_dim = 8
    hidden_dim = 32
    output_dim = 4
    num_graphs = 2  # static (avoids host sync on jnp.max(idx))

    X = jax.random.normal(k_x, (N, input_dim), jnp.float32)
    # random dense 0/1 adjacency with self-loops
    A = (jax.random.uniform(k_a, (N, N)) < 0.3).astype(jnp.float32)
    A = jnp.maximum(A, A.T)
    A = jnp.maximum(A, jnp.eye(N, dtype=jnp.float32))
    # two graphs of 8 nodes each
    idx = jnp.concatenate([jnp.zeros(8, jnp.int32), jnp.ones(8, jnp.int32)])

    params = init_params(k_p, input_dim, hidden_dim, output_dim)

    for aggr, rdout in (("sum", "sum"), ("mean", "mean")):
        out = gnn_forward(X, A, idx, params, num_graphs=num_graphs,
                          neighbor_aggr=aggr, readout=rdout)
        out = jax.block_until_ready(out)
        assert out.shape == (num_graphs, output_dim)
        ref = gnn_reference(X, A, idx, params, num_graphs=num_graphs,
                            neighbor_aggr=aggr, readout=rdout)
        rel = float(jnp.linalg.norm(out - ref) / (jnp.linalg.norm(ref) + 1e-6))
        assert rel < 0.1, f"{aggr}/{rdout}: relative error {rel}"

    print("KERNEL_OK")
</pallas_src>

<mosaic_0001>
module attributes {stable_mosaic.version = 11 : i64} {
  func.func @_mp_kernel(%arg0: i32, %arg1: i32, %arg2: memref<256x128xbf16, #tpu.memory_space<vmem>>, %arg3: memref<256x128xbf16, #tpu.memory_space<vmem>>, %arg4: memref<256x256xbf16, #tpu.memory_space<vmem>>, %arg5: memref<256x1xf32, #tpu.memory_space<vmem>>, %arg6: memref<128x128xbf16, #tpu.memory_space<vmem>>, %arg7: memref<128x128xbf16, #tpu.memory_space<vmem>>, %arg8: memref<256x128xbf16, #tpu.memory_space<vmem>>, %arg9: memref<256x128xf32, #tpu.memory_space<vmem>>) attributes {dimension_semantics = [#tpu.dimension_semantics<parallel>, #tpu.dimension_semantics<arbitrary>], iteration_bounds = array<i64: 1, 1>, scalar_prefetch = 0 : i64, scratch_operands = 1 : i64, tpu.core_type = #tpu.core_type<tc>, window_params = [{transform_indices = @transform_0, window_bounds = array<i64: 256, 128>}, {transform_indices = @transform_1, window_bounds = array<i64: 256, 128>}, {transform_indices = @transform_2, window_bounds = array<i64: 256, 256>}, {transform_indices = @transform_3, window_bounds = array<i64: 256, 1>}, {pipeline_mode = #tpu.pipeline_mode<synchronous>, transform_indices = @transform_4, window_bounds = array<i64: 128, 128>}, {pipeline_mode = #tpu.pipeline_mode<synchronous>, transform_indices = @transform_5, window_bounds = array<i64: 128, 128>}, {transform_indices = @transform_6, window_bounds = array<i64: 256, 128>}]} {
    %c0_i32 = arith.constant 0 : i32
    %0 = arith.cmpi eq, %arg1, %c0_i32 : i32
    %1 = arith.extui %0 : i1 to i32
    %c0_i32_0 = arith.constant 0 : i32
    %2 = arith.cmpi ne, %1, %c0_i32_0 : i32
    scf.if %2 {
      %cst_10 = arith.constant 0.000000e+00 : f32
      %12 = vector.broadcast %cst_10 : f32 to vector<256x128xf32>
      %c0_11 = arith.constant 0 : index
      %c0_12 = arith.constant 0 : index
      %13 = vector.load %arg9[%c0_11, %c0_12] : memref<256x128xf32, #tpu.memory_space<vmem>>, vector<256x128xf32>
      tpu.vector_store %arg9[%c0_11, %c0_12], %12 {strides = array<i32>} : memref<256x128xf32, #tpu.memory_space<vmem>>, vector<256x128xf32>,
    } else {
    }
    %c0 = arith.constant 0 : index
    %c0_1 = arith.constant 0 : index
    %3 = vector.load %arg9[%c0, %c0_1] : memref<256x128xf32, #tpu.memory_space<vmem>>, vector<256x128xf32>
    %c0_2 = arith.constant 0 : index
    %c0_3 = arith.constant 0 : index
    %4 = vector.load %arg4[%c0_2, %c0_3] : memref<256x256xbf16, #tpu.memory_space<vmem>>, vector<256x256xbf16>
    %c0_4 = arith.constant 0 : index
    %c0_5 = arith.constant 0 : index
    %5 = vector.load %arg3[%c0_4, %c0_5] : memref<256x128xbf16, #tpu.memory_space<vmem>>, vector<256x128xbf16>
    %cst = arith.constant dense<0.000000e+00> : vector<256x128xf32>
    %6 = tpu.matmul %4, %5, %cst {dimension_numbers = #tpu.dot_dimension_numbers<[1], [0], [0], [1], [0, 0, 1, 1], [], []>} : vector<256x256xbf16>, vector<256x128xbf16>, vector<256x128xf32> -> vector<256x128xf32>
    %7 = arith.addf %3, %6 : vector<256x128xf32>
    %c0_6 = arith.constant 0 : index
    %c0_7 = arith.constant 0 : index
    %8 = vector.load %arg9[%c0_6, %c0_7] : memref<256x128xf32, #tpu.memory_space<vmem>>, vector<256x128xf32>
    tpu.vector_store %arg9[%c0_6, %c0_7], %7 {strides = array<i32>} : memref<256x128xf32, #tpu.memory_space<vmem>>, vector<256x128xf32>,
    %c0_i32_8 = arith.constant 0 : i32
    %9 = arith.cmpi eq, %arg1, %c0_i32_8 : i32
    %10 = arith.extui %9 : i1 to i32
    %c0_i32_9 = arith.constant 0 : i32
    %11 = arith.cmpi ne, %10, %c0_i32_9 : i32
    scf.if %11 {
      %c0_10 = arith.constant 0 : index
      %c0_11 = arith.constant 0 : index
      %12 = vector.load %arg2[%c0_10, %c0_11] : memref<256x128xbf16, #tpu.memory_space<vmem>>, vector<256x128xbf16>
      %c0_12 = arith.constant 0 : index
      %c0_13 = arith.constant 0 : index
      %13 = vector.load %arg6[%c0_12, %c0_13] : memref<128x128xbf16, #tpu.memory_space<vmem>>, vector<128x128xbf16>
      %cst_14 = arith.constant dense<0.000000e+00> : vector<256x128xf32>
      %14 = tpu.matmul %12, %13, %cst_14 {dimension_numbers = #tpu.dot_dimension_numbers<[1], [0], [0], [1], [0, 0, 1, 1], [], []>} : vector<256x128xbf16>, vector<128x128xbf16>, vector<256x128xf32> -> vector<256x128xf32>
      %c0_15 = arith.constant 0 : index
      %c0_16 = arith.constant 0 : index
      %15 = vector.load %arg9[%c0_15, %c0_16] : memref<256x128xf32, #tpu.memory_space<vmem>>, vector<256x128xf32>
      %16 = arith.truncf %15 : vector<256x128xf32> to vector<256x128xbf16>
      %c0_17 = arith.constant 0 : index
      %c0_18 = arith.constant 0 : index
      %17 = vector.load %arg7[%c0_17, %c0_18] : memref<128x128xbf16, #tpu.memory_space<vmem>>, vector<128x128xbf16>
      %cst_19 = arith.constant dense<0.000000e+00> : vector<256x128xf32>
      %18 = tpu.matmul %16, %17, %cst_19 {dimension_numbers = #tpu.dot_dimension_numbers<[1], [0], [0], [1], [0, 0, 1, 1], [], []>} : vector<256x128xbf16>, vector<128x128xbf16>, vector<256x128xf32> -> vector<256x128xf32>
      %c0_20 = arith.constant 0 : index
      %c0_21 = arith.constant 0 : index
      %19 = vector.load %arg5[%c0_20, %c0_21] : memref<256x1xf32, #tpu.memory_space<vmem>>, vector<256x1xf32>
      %20 = vector.broadcast %19 : vector<256x1xf32> to vector<256x128xf32>
      %21 = arith.mulf %20, %18 : vector<256x128xf32>
      %22 = arith.addf %14, %21 : vector<256x128xf32>
      %cst_22 = arith.constant 0.000000e+00 : f32
      %23 = vector.broadcast %cst_22 : f32 to vector<256x128xf32>
      %24 = arith.maximumf %22, %23 : vector<256x128xf32>
      %25 = arith.truncf %24 : vector<256x128xf32> to vector<256x128xbf16>
      %c0_23 = arith.constant 0 : index
      %c0_24 = arith.constant 0 : index
      %26 = vector.load %arg8[%c0_23, %c0_24] : memref<256x128xbf16, #tpu.memory_space<vmem>>, vector<256x128xbf16>
      tpu.vector_store %arg8[%c0_23, %c0_24], %25 {strides = array<i32>} : memref<256x128xbf16, #tpu.memory_space<vmem>>, vector<256x128xbf16>,
    } else {
    }
    return
  }
  func.func @transform_0(%arg0: i32, %arg1: i32) -> (i32, i32) {
    %c0_i32 = arith.constant 0 : i32
    %c0_i32_0 = arith.constant 0 : i32
    return %arg0, %c0_i32 : i32, i32
  }
  func.func @transform_1(%arg0: i32, %arg1: i32) -> (i32, i32) {
    %c0_i32 = arith.constant 0 : i32
    %c0_i32_0 = arith.constant 0 : i32
    return %arg1, %c0_i32 : i32, i32
  }
  func.func @transform_2(%arg0: i32, %arg1: i32) -> (i32, i32) {
    %c0_i32 = arith.constant 0 : i32
    return %arg0, %arg1 : i32, i32
  }
  func.func @transform_3(%arg0: i32, %arg1: i32) -> (i32, i32) {
    %c0_i32 = arith.constant 0 : i32
    %c0_i32_0 = arith.constant 0 : i32
    return %arg0, %c0_i32 : i32, i32
  }
  func.func @transform_4(%arg0: i32, %arg1: i32) -> (i32, i32) {
    %c0_i32 = arith.constant 0 : i32
    %c0_i32_0 = arith.constant 0 : i32
    %c0_i32_1 = arith.constant 0 : i32
    return %c0_i32, %c0_i32_0 : i32, i32
  }
  func.func @transform_5(%arg0: i32, %arg1: i32) -> (i32, i32) {
    %c0_i32 = arith.constant 0 : i32
    %c0_i32_0 = arith.constant 0 : i32
    %c0_i32_1 = arith.constant 0 : i32
    return %c0_i32, %c0_i32_0 : i32, i32
  }
  func.func @transform_6(%arg0: i32, %arg1: i32) -> (i32, i32) {
    %c0_i32 = arith.constant 0 : i32
    %c0_i32_0 = arith.constant 0 : i32
    return %arg0, %c0_i32 : i32, i32
  }
}

</mosaic_0001>

<llo_original>
// kernel: tpu_custom_call.1
$region0: #{tpu_custom_call.1}
  #allocation0 [shape = 'u32[]', space=smem, size = 0x4, offset = 0x4, fixed_abs, tag = 'smem constant byte address 0x4 - core index']
  #allocation1 [shape = 'u32[72,128]{1,0:T(1,128)}', space=vmem, size = 0x9000, scoped, tag = 'internal scratch']
  #allocation2 [shape = 'f32[256,128]{1,0:T(8,128)}', space=vmem, size = 0x20000, scoped, tag = 'scratch operand']
  %s0 = inlined_call_operand.hbm [shape: bf16[256,128], index: 0, kind: input, shape index: {}]
  %s1 = inlined_call_operand.hbm [shape: bf16[256,128], index: 1, kind: input, shape index: {}]
  %s2 = inlined_call_operand.vmem [shape: bf16[256,256], index: 2, kind: input, shape index: {}]
  %s3 = inlined_call_operand.vmem [shape: f32[256,1], index: 3, kind: input, shape index: {}]
  %s4 = inlined_call_operand.hbm [shape: bf16[128,128], index: 4, kind: input, shape index: {}]
  %s5 = inlined_call_operand.hbm [shape: bf16[128,128], index: 5, kind: input, shape index: {}]
  %s6 = inlined_call_operand.hbm [shape: bf16[256,128], index: 6, kind: output, shape index: {}]
  %s7 = sld [smem:[#allocation0]]
  $region58: #{tpu_custom_call.1} parent=0
    _
  %s9 = ssub.s32 1, %s7
  %s10 = scalar_select 0, %s9, %s7
  $region1: #{tpu_custom_call.1} parent=0
    #allocation3 [shape = 'u8[65536]{0}', space=vmem, size = 0x10000, scoped, tag = 'input window, operand 0, single buffered']
    #allocation4 [shape = 's32[1]{0}', space=sflag, size = 0x4, scoped, tag = 'scoped memory for tpu_custom_call.1']
    #allocation5 [shape = 's32[1]{0}', space=sflag, size = 0x4, scoped, tag = 'scoped memory for tpu_custom_call.1']
    #allocation6 [shape = 'u8[65536]{0}', space=vmem, size = 0x10000, scoped, tag = 'input window, operand 1, single buffered']
    #allocation7 [shape = 's32[1]{0}', space=sflag, size = 0x4, scoped, tag = 'scoped memory for tpu_custom_call.1']
    #allocation8 [shape = 'u8[32768]{0}', space=vmem, size = 0x8000, scoped, tag = 'input window, operand 4, single buffered']
    #allocation9 [shape = 'u8[32768]{0}', space=vmem, size = 0x8000, scoped, tag = 'input window, operand 5, single buffered']
    #allocation10 [shape = 's32[1]{0}', space=sflag, size = 0x4, scoped, tag = 'scoped memory for tpu_custom_call.1']
    #allocation11 [shape = 'u8[65536]{0}', space=vmem, size = 0x10000, scoped, tag = 'output window, operand 0, single buffered']
    %11 = vsyncpa [#allocation4], 0
    %12 = vsyncpa [#allocation7], 0
    %13 = vsyncpa [#allocation10], 0
    %14 = vsyncpa [#allocation5], 0
    // Predicated region
    $region2: #{tpu_custom_call.1} parent=1 // pred_check
      _
    $region3: #{tpu_custom_call.1} parent=1 // pred_check_branch
      %16 = sbr.rel (0) target = $region5
    $region4: #{tpu_custom_call.1} parent=1 // pred_region
      %18 = vsyncadd [#allocation4], 0
      %s19 = sshll.u32 %s0, 4
      %s20 = int_to_ptr.hbm [resolvable:$true] %s19
      %s21 = sshll.u32 [#allocation3], 4
      %s22 = int_to_ptr.vmem [resolvable:$true] %s21
      %27 = dma.hbm_to_vmem [thread:$0]  %s20, 2048, %s22, [#allocation4], 64, 64, 4
    $region5: #{tpu_custom_call.1} parent=1 // pred_fallthru
      _
    // Predicated region
    $region6: #{tpu_custom_call.1} parent=1 // pred_check
      _
    $region7: #{tpu_custom_call.1} parent=1 // pred_check_branch
      %29 = sbr.rel (0) target = $region9
    $region8: #{tpu_custom_call.1} parent=1 // pred_region
      %31 = vsyncadd [#allocation7], 0
      %s32 = sshll.u32 %s1, 4
      %s33 = int_to_ptr.hbm [resolvable:$true] %s32
      %s34 = sshll.u32 [#allocation6], 4
      %s35 = int_to_ptr.vmem [resolvable:$true] %s34
      %40 = dma.hbm_to_vmem [thread:$0]  %s33, 2048, %s35, [#allocation7], 64, 64, 4
    $region9: #{tpu_custom_call.1} parent=1 // pred_fallthru
      _
    // Predicated region
    $region10: #{tpu_custom_call.1} parent=1 // pred_check
      _
    $region11: #{tpu_custom_call.1} parent=1 // pred_check_branch
      %42 = sbr.rel (0) target = $region13
    $region12: #{tpu_custom_call.1} parent=1 // pred_region
      _
    $region13: #{tpu_custom_call.1} parent=1 // pred_fallthru
      _
    // Predicated region
    $region14: #{tpu_custom_call.1} parent=1 // pred_check
      _
    $region15: #{tpu_custom_call.1} parent=1 // pred_check_branch
      %44 = sbr.rel (0) target = $region17
    $region16: #{tpu_custom_call.1} parent=1 // pred_region
      _
    $region17: #{tpu_custom_call.1} parent=1 // pred_fallthru
      _
    // Predicated region
    $region18: #{tpu_custom_call.1} parent=1 // pred_check
      _
    $region19: #{tpu_custom_call.1} parent=1 // pred_check_branch
      %46 = sbr.rel (0) target = $region21
    $region20: #{tpu_custom_call.1} parent=1 // pred_region
      %48 = vsyncadd [#allocation7], 0
      %s49 = sshll.u32 %s4, 4
      %s50 = int_to_ptr.hbm [resolvable:$true] %s49
      %s51 = sshll.u32 [#allocation8], 4
      %s52 = int_to_ptr.vmem [resolvable:$true] %s51
      %57 = dma.hbm_to_vmem [thread:$0]  %s50, 1024, %s52, [#allocation7], 64, 64, 4
    $region21: #{tpu_custom_call.1} parent=1 // pred_fallthru
      _
    // Predicated region
    $region22: #{tpu_custom_call.1} parent=1 // pred_check
      _
    $region23: #{tpu_custom_call.1} parent=1 // pred_check_branch
      %59 = sbr.rel (0) target = $region25
    $region24: #{tpu_custom_call.1} parent=1 // pred_region
      %61 = vsyncadd [#allocation10], 0
      %s62 = sshll.u32 %s5, 4
      %s63 = int_to_ptr.hbm [resolvable:$true] %s62
      %s64 = sshll.u32 [#allocation9], 4
      %s65 = int_to_ptr.vmem [resolvable:$true] %s64
      %70 = dma.hbm_to_vmem [thread:$0]  %s63, 1024, %s65, [#allocation10], 64, 64, 4
    $region25: #{tpu_custom_call.1} parent=1 // pred_fallthru
      _
    // Predicated region
    $region26: #{tpu_custom_call.1} parent=1 // pred_check
      _
    $region27: #{tpu_custom_call.1} parent=1 // pred_check_branch
      %72 = sbr.rel (0) target = $region29
    $region28: #{tpu_custom_call.1} parent=1 // pred_region
      %74 = dma.done [#allocation4], 2048
    $region29: #{tpu_custom_call.1} parent=1 // pred_fallthru
      _
    // Predicated region
    $region30: #{tpu_custom_call.1} parent=1 // pred_check
      _
    $region31: #{tpu_custom_call.1} parent=1 // pred_check_branch
      %76 = sbr.rel (0) target = $region33
    $region32: #{tpu_custom_call.1} parent=1 // pred_region
      %78 = dma.done [#allocation7], 2048
    $region33: #{tpu_custom_call.1} parent=1 // pred_fallthru
      _
    // Predicated region
    $region34: #{tpu_custom_call.1} parent=1 // pred_check
      _
    $region35: #{tpu_custom_call.1} parent=1 // pred_check_branch
      %80 = sbr.rel (0) target = $region37
    $region36: #{tpu_custom_call.1} parent=1 // pred_region
      %82 = dma.done [#allocation7], 1024
    $region37: #{tpu_custom_call.1} parent=1 // pred_fallthru
      _
    // Predicated region
    $region38: #{tpu_custom_call.1} parent=1 // pred_check
      _
    $region39: #{tpu_custom_call.1} parent=1 // pred_check_branch
      %84 = sbr.rel (0) target = $region41
    $region40: #{tpu_custom_call.1} parent=1 // pred_region
      %86 = dma.done [#allocation10], 1024
    $region41: #{tpu_custom_call.1} parent=1 // pred_fallthru
      _
    %p87 = scmp.eq.s32.totalorder 0, 0
    // Predicated region
    $region42: #{tpu_custom_call.1} parent=1 // pred_check
      %p88 = pneg %p87
    $region43: #{tpu_custom_call.1} parent=1 // pred_check_branch
      %90 = sbr.rel (%p88) target = $region45
    $region44: #{tpu_custom_call.1} parent=1 // pred_region
      %91 = vst [vmem:[#allocation2] sm:$0xff] 0.0
      %92 = vst [vmem:[#allocation2 + $0x8] sm:$0xff] 0.0
      %93 = vst [vmem:[#allocation2 + $0x10] sm:$0xff] 0.0
      %94 = vst [vmem:[#allocation2 + $0x18] sm:$0xff] 0.0
      %95 = vst [vmem:[#allocation2 + $0x20] sm:$0xff] 0.0
      %96 = vst [vmem:[#allocation2 + $0x28] sm:$0xff] 0.0
      %97 = vst [vmem:[#allocation2 + $0x30] sm:$0xff] 0.0
      %98 = vst [vmem:[#allocation2 + $0x38] sm:$0xff] 0.0
      %99 = vst [vmem:[#allocation2 + $0x40] sm:$0xff] 0.0
      %100 = vst [vmem:[#allocation2 + $0x48] sm:$0xff] 0.0
      %101 = vst [vmem:[#allocation2 + $0x50] sm:$0xff] 0.0
      %102 = vst [vmem:[#allocation2 + $0x58] sm:$0xff] 0.0
      %103 = vst [vmem:[#allocation2 + $0x60] sm:$0xff] 0.0
      %104 = vst [vmem:[#allocation2 + $0x68] sm:$0xff] 0.0
      %105 = vst [vmem:[#allocation2 + $0x70] sm:$0xff] 0.0
      %106 = vst [vmem:[#allocation2 + $0x78] sm:$0xff] 0.0
      %107 = vst [vmem:[#allocation2 + $0x80] sm:$0xff] 0.0
      %108 = vst [vmem:[#allocation2 + $0x88] sm:$0xff] 0.0
      %109 = vst [vmem:[#allocation2 + $0x90] sm:$0xff] 0.0
      %110 = vst [vmem:[#allocation2 + $0x98] sm:$0xff] 0.0
      %111 = vst [vmem:[#allocation2 + $0xa0] sm:$0xff] 0.0
      %112 = vst [vmem:[#allocation2 + $0xa8] sm:$0xff] 0.0
      %113 = vst [vmem:[#allocation2 + $0xb0] sm:$0xff] 0.0
      %114 = vst [vmem:[#allocation2 + $0xb8] sm:$0xff] 0.0
      %115 = vst [vmem:[#allocation2 + $0xc0] sm:$0xff] 0.0
      %116 = vst [vmem:[#allocation2 + $0xc8] sm:$0xff] 0.0
      %117 = vst [vmem:[#allocation2 + $0xd0] sm:$0xff] 0.0
      %118 = vst [vmem:[#allocation2 + $0xd8] sm:$0xff] 0.0
      %119 = vst [vmem:[#allocation2 + $0xe0] sm:$0xff] 0.0
      %120 = vst [vmem:[#allocation2 + $0xe8] sm:$0xff] 0.0
      %121 = vst [vmem:[#allocation2 + $0xf0] sm:$0xff] 0.0
      %122 = vst [vmem:[#allocation2 + $0xf8] sm:$0xff] 0.0
    $region45: #{tpu_custom_call.1} parent=1 // pred_fallthru
      _
    %v123 = vld [vmem:[#allocation2] sm:$0xff]
    %v124 = vld [vmem:[#allocation2 + $0x8] sm:$0xff]
    %v125 = vld [vmem:[#allocation2 + $0x10] sm:$0xff]
    %v126 = vld [vmem:[#allocation2 + $0x18] sm:$0xff]
    %v127 = vld [vmem:[#allocation2 + $0x20] sm:$0xff]
    %v128 = vld [vmem:[#allocation2 + $0x28] sm:$0xff]
    %v129 = vld [vmem:[#allocation2 + $0x30] sm:$0xff]
    %v130 = vld [vmem:[#allocation2 + $0x38] sm:$0xff]
    %v131 = vld [vmem:[#allocation2 + $0x40] sm:$0xff]
    %v132 = vld [vmem:[#allocation2 + $0x48] sm:$0xff]
    %v133 = vld [vmem:[#allocation2 + $0x50] sm:$0xff]
    %v134 = vld [vmem:[#allocation2 + $0x58] sm:$0xff]
    %v135 = vld [vmem:[#allocation2 + $0x60] sm:$0xff]
    %v136 = vld [vmem:[#allocation2 + $0x68] sm:$0xff]
    %v137 = vld [vmem:[#allocation2 + $0x70] sm:$0xff]
    %v138 = vld [vmem:[#allocation2 + $0x78] sm:$0xff]
    %v139 = vld [vmem:[#allocation2 + $0x80] sm:$0xff]
    %v140 = vld [vmem:[#allocation2 + $0x88] sm:$0xff]
    %v141 = vld [vmem:[#allocation2 + $0x90] sm:$0xff]
    %v142 = vld [vmem:[#allocation2 + $0x98] sm:$0xff]
    %v143 = vld [vmem:[#allocation2 + $0xa0] sm:$0xff]
    %v144 = vld [vmem:[#allocation2 + $0xa8] sm:$0xff]
    %v145 = vld [vmem:[#allocation2 + $0xb0] sm:$0xff]
    %v146 = vld [vmem:[#allocation2 + $0xb8] sm:$0xff]
    %v147 = vld [vmem:[#allocation2 + $0xc0] sm:$0xff]
    %v148 = vld [vmem:[#allocation2 + $0xc8] sm:$0xff]
    %v149 = vld [vmem:[#allocation2 + $0xd0] sm:$0xff]
    %v150 = vld [vmem:[#allocation2 + $0xd8] sm:$0xff]
    %v151 = vld [vmem:[#allocation2 + $0xe0] sm:$0xff]
    %v152 = vld [vmem:[#allocation2 + $0xe8] sm:$0xff]
    %v153 = vld [vmem:[#allocation2 + $0xf0] sm:$0xff]
    %v154 = vld [vmem:[#allocation2 + $0xf8] sm:$0xff]
    %v155 = vld [vmem:[%s2] sm:$0xff]
    %v156 = vld [vmem:[%s2 + $0x8] sm:$0xff]
    %v157 = vld [vmem:[%s2 + $0x10] sm:$0xff]
    %v158 = vld [vmem:[%s2 + $0x18] sm:$0xff]
    %v159 = vld [vmem:[%s2 + $0x20] sm:$0xff]
    %v160 = vld [vmem:[%s2 + $0x28] sm:$0xff]
    %v161 = vld [vmem:[%s2 + $0x30] sm:$0xff]
    %v162 = vld [vmem:[%s2 + $0x38] sm:$0xff]
    %v163 = vld [vmem:[%s2 + $0x40] sm:$0xff]
    %v164 = vld [vmem:[%s2 + $0x48] sm:$0xff]
    %v165 = vld [vmem:[%s2 + $0x50] sm:$0xff]
    %v166 = vld [vmem:[%s2 + $0x58] sm:$0xff]
    %v167 = vld [vmem:[%s2 + $0x60] sm:$0xff]
    %v168 = vld [vmem:[%s2 + $0x68] sm:$0xff]
    %v169 = vld [vmem:[%s2 + $0x70] sm:$0xff]
    %v170 = vld [vmem:[%s2 + $0x78] sm:$0xff]
    %v171 = vld [vmem:[%s2 + $0x80] sm:$0xff]
    %v172 = vld [vmem:[%s2 + $0x88] sm:$0xff]
    %v173 = vld [vmem:[%s2 + $0x90] sm:$0xff]
    %v174 = vld [vmem:[%s2 + $0x98] sm:$0xff]
    %v175 = vld [vmem:[%s2 + $0xa0] sm:$0xff]
    %v176 = vld [vmem:[%s2 + $0xa8] sm:$0xff]
    %v177 = vld [vmem:[%s2 + $0xb0] sm:$0xff]
    %v178 = vld [vmem:[%s2 + $0xb8] sm:$0xff]
    %v179 = vld [vmem:[%s2 + $0xc0] sm:$0xff]
    %v180 = vld [vmem:[%s2 + $0xc8] sm:$0xff]
    %v181 = vld [vmem:[%s2 + $0xd0] sm:$0xff]
    %v182 = vld [vmem:[%s2 + $0xd8] sm:$0xff]
    %v183 = vld [vmem:[%s2 + $0xe0] sm:$0xff]
    %v184 = vld [vmem:[%s2 + $0xe8] sm:$0xff]
    %v185 = vld [vmem:[%s2 + $0xf0] sm:$0xff]
    %v186 = vld [vmem:[%s2 + $0xf8] sm:$0xff]
    %v187 = vld [vmem:[#allocation6] sm:$0xf]
    %v188 = vld [vmem:[#allocation6 + $0x4] sm:$0xf]
    %v189 = vld [vmem:[#allocation6 + $0x8] sm:$0xf]
    %v190 = vld [vmem:[#allocation6 + $0xc] sm:$0xf]
    %v191 = vld [vmem:[#allocation6 + $0x10] sm:$0xf]
    %v192 = vld [vmem:[#allocation6 + $0x14] sm:$0xf]
    %v193 = vld [vmem:[#allocation6 + $0x18] sm:$0xf]
    %v194 = vld [vmem:[#allocation6 + $0x1c] sm:$0xf]
    %v195 = vld [vmem:[#allocation6 + $0x20] sm:$0xf]
    %v196 = vld [vmem:[#allocation6 + $0x24] sm:$0xf]
    %v197 = vld [vmem:[#allocation6 + $0x28] sm:$0xf]
    %v198 = vld [vmem:[#allocation6 + $0x2c] sm:$0xf]
    %v199 = vld [vmem:[#allocation6 + $0x30] sm:$0xf]
    %v200 = vld [vmem:[#allocation6 + $0x34] sm:$0xf]
    %v201 = vld [vmem:[#allocation6 + $0x38] sm:$0xf]
    %v202 = vld [vmem:[#allocation6 + $0x3c] sm:$0xf]
    %v203 = vld [vmem:[#allocation6 + $0x40] sm:$0xf]
    %v204 = vld [vmem:[#allocation6 + $0x44] sm:$0xf]
    %v205 = vld [vmem:[#allocation6 + $0x48] sm:$0xf]
    %v206 = vld [vmem:[#allocation6 + $0x4c] sm:$0xf]
    %v207 = vld [vmem:[#allocation6 + $0x50] sm:$0xf]
    %v208 = vld [vmem:[#allocation6 + $0x54] sm:$0xf]
    %v209 = vld [vmem:[#allocation6 + $0x58] sm:$0xf]
    %v210 = vld [vmem:[#allocation6 + $0x5c] sm:$0xf]
    %v211 = vld [vmem:[#allocation6 + $0x60] sm:$0xf]
    %v212 = vld [vmem:[#allocation6 + $0x64] sm:$0xf]
    %v213 = vld [vmem:[#allocation6 + $0x68] sm:$0xf]
    %v214 = vld [vmem:[#allocation6 + $0x6c] sm:$0xf]
    %v215 = vld [vmem:[#allocation6 + $0x70] sm:$0xf]
    %v216 = vld [vmem:[#allocation6 + $0x74] sm:$0xf]
    %v217 = vld [vmem:[#allocation6 + $0x78] sm:$0xf]
    %v218 = vld [vmem:[#allocation6 + $0x7c] sm:$0xf]
    %v251 = vunpack.c.l.b16 %v155
    %v252 = vunpack.c.h.b16 %v155
    %v253 = vunpack.c.l.b16 %v156
    %v254 = vunpack.c.h.b16 %v156
    %v255 = vunpack.c.l.b16 %v157
    %v256 = vunpack.c.h.b16 %v157
    %v257 = vunpack.c.l.b16 %v158
    %v258 = vunpack.c.h.b16 %v158
    %v259 = vunpack.c.l.b16 %v159
    %v260 = vunpack.c.h.b16 %v159
    %v261 = vunpack.c.l.b16 %v160
    %v262 = vunpack.c.h.b16 %v160
    %v263 = vunpack.c.l.b16 %v161
    %v264 = vunpack.c.h.b16 %v161
    %v265 = vunpack.c.l.b16 %v162
    %v266 = vunpack.c.h.b16 %v162
    %v267 = vunpack.c.l.b16 %v163
    %v268 = vunpack.c.h.b16 %v163
    %v269 = vunpack.c.l.b16 %v164
    %v270 = vunpack.c.h.b16 %v164
    %v271 = vunpack.c.l.b16 %v165
    %v272 = vunpack.c.h.b16 %v165
    %v273 = vunpack.c.l.b16 %v166
    %v274 = vunpack.c.h.b16 %v166
    %v275 = vunpack.c.l.b16 %v167
    %v276 = vunpack.c.h.b16 %v167
    %v277 = vunpack.c.l.b16 %v168
    %v278 = vunpack.c.h.b16 %v168
    %v279 = vunpack.c.l.b16 %v169
    %v280 = vunpack.c.h.b16 %v169
    %v281 = vunpack.c.l.b16 %v170
    %v282 = vunpack.c.h.b16 %v170
    %v283 = vunpack.c.l.b16 %v171
    %v284 = vunpack.c.h.b16 %v171
    %v285 = vunpack.c.l.b16 %v172
    %v286 = vunpack.c.h.b16 %v172
    %v287 = vunpack.c.l.b16 %v173
    %v288 = vunpack.c.h.b16 %v173
    %v289 = vunpack.c.l.b16 %v174
    %v290 = vunpack.c.h.b16 %v174
    %v291 = vunpack.c.l.b16 %v175
    %v292 = vunpack.c.h.b16 %v175
    %v293 = vunpack.c.l.b16 %v176
    %v294 = vunpack.c.h.b16 %v176
    %v295 = vunpack.c.l.b16 %v177
    %v296 = vunpack.c.h.b16 %v177
    %v297 = vunpack.c.l.b16 %v178
    %v298 = vunpack.c.h.b16 %v178
    %v299 = vunpack.c.l.b16 %v179
    %v300 = vunpack.c.h.b16 %v179
    %v301 = vunpack.c.l.b16 %v180
    %v302 = vunpack.c.h.b16 %v180
    %v303 = vunpack.c.l.b16 %v181
    %v304 = vunpack.c.h.b16 %v181
    %v305 = vunpack.c.l.b16 %v182
    %v306 = vunpack.c.h.b16 %v182
    %v307 = vunpack.c.l.b16 %v183
    %v308 = vunpack.c.h.b16 %v183
    %v309 = vunpack.c.l.b16 %v184
    %v310 = vunpack.c.h.b16 %v184
    %v311 = vunpack.c.l.b16 %v185
    %v312 = vunpack.c.h.b16 %v185
    %v313 = vunpack.c.l.b16 %v186
    %v314 = vunpack.c.h.b16 %v186
    %v315 = vpack.c.b16 %v253, %v251
    %v316 = vpack.c.b16 %v254, %v252
    %v317 = vpack.c.b16 %v257, %v255
    %v318 = vpack.c.b16 %v258, %v256
    %v319 = vpack.c.b16 %v261, %v259
    %v320 = vpack.c.b16 %v262, %v260
    %v321 = vpack.c.b16 %v265, %v263
    %v322 = vpack.c.b16 %v266, %v264
    %v323 = vpack.c.b16 %v269, %v267
    %v324 = vpack.c.b16 %v270, %v268
    %v325 = vpack.c.b16 %v273, %v271
    %v326 = vpack.c.b16 %v274, %v272
    %v327 = vpack.c.b16 %v277, %v275
    %v328 = vpack.c.b16 %v278, %v276
    %v329 = vpack.c.b16 %v281, %v279
    %v330 = vpack.c.b16 %v282, %v280
    %v331 = vpack.c.b16 %v285, %v283
    %v332 = vpack.c.b16 %v286, %v284
    %v333 = vpack.c.b16 %v289, %v287
    %v334 = vpack.c.b16 %v290, %v288
    %v335 = vpack.c.b16 %v293, %v291
    %v336 = vpack.c.b16 %v294, %v292
    %v337 = vpack.c.b16 %v297, %v295
    %v338 = vpack.c.b16 %v298, %v296
    %v339 = vpack.c.b16 %v301, %v299
    %v340 = vpack.c.b16 %v302, %v300
    %v341 = vpack.c.b16 %v305, %v303
    %v342 = vpack.c.b16 %v306, %v304
    %v343 = vpack.c.b16 %v309, %v307
    %v344 = vpack.c.b16 %v310, %v308
    %v345 = vpack.c.b16 %v313, %v311
    %v346 = vpack.c.b16 %v314, %v312
    %v411 = vunpack.c.l.b16 %v187
    %v412 = vunpack.c.l.b16 %v188
    %v413 = vunpack.c.l.b16 %v189
    %v414 = vunpack.c.l.b16 %v190
    %v415 = vunpack.c.l.b16 %v191
    %v416 = vunpack.c.l.b16 %v192
    %v417 = vunpack.c.l.b16 %v193
    %v418 = vunpack.c.l.b16 %v194
    %v419 = vunpack.c.l.b16 %v195
    %v420 = vunpack.c.l.b16 %v196
    %v421 = vunpack.c.l.b16 %v197
    %v422 = vunpack.c.l.b16 %v198
    %v423 = vunpack.c.l.b16 %v199
    %v424 = vunpack.c.l.b16 %v200
    %v425 = vunpack.c.l.b16 %v201
    %v426 = vunpack.c.l.b16 %v202
    %v427 = vunpack.c.l.b16 %v203
    %v428 = vunpack.c.l.b16 %v204
    %v429 = vunpack.c.l.b16 %v205
    %v430 = vunpack.c.l.b16 %v206
    %v431 = vunpack.c.l.b16 %v207
    %v432 = vunpack.c.l.b16 %v208
    %v433 = vunpack.c.l.b16 %v209
    %v434 = vunpack.c.l.b16 %v210
    %v435 = vunpack.c.l.b16 %v211
    %v436 = vunpack.c.l.b16 %v212
    %v437 = vunpack.c.l.b16 %v213
    %v438 = vunpack.c.l.b16 %v214
    %v439 = vunpack.c.l.b16 %v215
    %v440 = vunpack.c.l.b16 %v216
    %v441 = vunpack.c.l.b16 %v217
    %v442 = vunpack.c.l.b16 %v218
    %v443 = vpack.c.b16 %v412, %v411
    %v444 = vpack.c.b16 %v414, %v413
    %v445 = vpack.c.b16 %v416, %v415
    %v446 = vpack.c.b16 %v418, %v417
    %v447 = vpack.c.b16 %v420, %v419
    %v448 = vpack.c.b16 %v422, %v421
    %v449 = vpack.c.b16 %v424, %v423
    %v450 = vpack.c.b16 %v426, %v425
    %v451 = vpack.c.b16 %v428, %v427
    %v452 = vpack.c.b16 %v430, %v429
    %v453 = vpack.c.b16 %v432, %v431
    %v454 = vpack.c.b16 %v434, %v433
    %v455 = vpack.c.b16 %v436, %v435
    %v456 = vpack.c.b16 %v438, %v437
    %v457 = vpack.c.b16 %v440, %v439
    %v458 = vpack.c.b16 %v442, %v441
    %475 = vmatpush.bf16.msra.mxu0 %v450
    %476 = vmatpush.bf16.msra.mxu0 %v449
    %477 = vmatpush.bf16.msra.mxu0 %v448
    %478 = vmatpush.bf16.msra.mxu0 %v447
    %479 = vmatpush.bf16.msra.mxu0 %v446
    %480 = vmatpush.bf16.msra.mxu0 %v445
    %481 = vmatpush.bf16.msra.mxu0 %v444
    %482 = vmatpush.bf16.msra.mxu0 %v443
    %483 = vmatmul.bf16.gmra.mxu0 %v315
    %v484 = vpop.f32.mrf.mxu0
    %v485 = vadd.f32 0.0, %v484
    %v486 = vpop.f32.mrf.mxu0
    %v487 = vadd.f32 0.0, %v486
    %488 = vmatmul.bf16.gmra.mxu0 %v317
    %v489 = vpop.f32.mrf.mxu0
    %v490 = vadd.f32 0.0, %v489
    %v491 = vpop.f32.mrf.mxu0
    %v492 = vadd.f32 0.0, %v491
    %493 = vmatmul.bf16.gmra.mxu0 %v319
    %v494 = vpop.f32.mrf.mxu0
    %v495 = vadd.f32 0.0, %v494
    %v496 = vpop.f32.mrf.mxu0
    %v497 = vadd.f32 0.0, %v496
    %498 = vmatmul.bf16.gmra.mxu0 %v321
    %v499 = vpop.f32.mrf.mxu0
    %v500 = vadd.f32 0.0, %v499
    %v501 = vpop.f32.mrf.mxu0
    %v502 = vadd.f32 0.0, %v501
    %503 = vmatmul.bf16.gmra.mxu0 %v323
    %v504 = vpop.f32.mrf.mxu0
    %v505 = vadd.f32 0.0, %v504
    %v506 = vpop.f32.mrf.mxu0
    %v507 = vadd.f32 0.0, %v506
    %508 = vmatmul.bf16.gmra.mxu0 %v325
    %v509 = vpop.f32.mrf.mxu0
    %v510 = vadd.f32 0.0, %v509
    %v511 = vpop.f32.mrf.mxu0
    %v512 = vadd.f32 0.0, %v511
    %513 = vmatmul.bf16.gmra.mxu0 %v327
    %v514 = vpop.f32.mrf.mxu0
    %v515 = vadd.f32 0.0, %v514
    %v516 = vpop.f32.mrf.mxu0
    %v517 = vadd.f32 0.0, %v516
    %518 = vmatmul.bf16.gmra.mxu0 %v329
    %v519 = vpop.f32.mrf.mxu0
    %v520 = vadd.f32 0.0, %v519
    %v521 = vpop.f32.mrf.mxu0
    %v522 = vadd.f32 0.0, %v521
    %523 = vmatmul.bf16.gmra.mxu0 %v331
    %v524 = vpop.f32.mrf.mxu0
    %v525 = vadd.f32 0.0, %v524
    %v526 = vpop.f32.mrf.mxu0
    %v527 = vadd.f32 0.0, %v526
    %528 = vmatmul.bf16.gmra.mxu0 %v333
    %v529 = vpop.f32.mrf.mxu0
    %v530 = vadd.f32 0.0, %v529
    %v531 = vpop.f32.mrf.mxu0
    %v532 = vadd.f32 0.0, %v531
    %533 = vmatmul.bf16.gmra.mxu0 %v335
    %v534 = vpop.f32.mrf.mxu0
    %v535 = vadd.f32 0.0, %v534
    %v536 = vpop.f32.mrf.mxu0
    %v537 = vadd.f32 0.0, %v536
    %538 = vmatmul.bf16.gmra.mxu0 %v337
    %v539 = vpop.f32.mrf.mxu0
    %v540 = vadd.f32 0.0, %v539
    %v541 = vpop.f32.mrf.mxu0
    %v542 = vadd.f32 0.0, %v541
    %543 = vmatmul.bf16.gmra.mxu0 %v339
    %v544 = vpop.f32.mrf.mxu0
    %v545 = vadd.f32 0.0, %v544
    %v546 = vpop.f32.mrf.mxu0
    %v547 = vadd.f32 0.0, %v546
    %548 = vmatmul.bf16.gmra.mxu0 %v341
    %v549 = vpop.f32.mrf.mxu0
    %v550 = vadd.f32 0.0, %v549
    %v551 = vpop.f32.mrf.mxu0
    %v552 = vadd.f32 0.0, %v551
    %553 = vmatmul.bf16.gmra.mxu0 %v343
    %v554 = vpop.f32.mrf.mxu0
    %v555 = vadd.f32 0.0, %v554
    %v556 = vpop.f32.mrf.mxu0
    %v557 = vadd.f32 0.0, %v556
    %558 = vmatmul.bf16.gmra.mxu0 %v345
    %v559 = vpop.f32.mrf.mxu0
    %v560 = vadd.f32 0.0, %v559
    %v561 = vpop.f32.mrf.mxu0
    %v562 = vadd.f32 0.0, %v561
    %563 = vdwg.mxu0
    %564 = vmatpush.bf16.msra.mxu0 %v458
    %565 = vmatpush.bf16.msra.mxu0 %v457
    %566 = vmatpush.bf16.msra.mxu0 %v456
    %567 = vmatpush.bf16.msra.mxu0 %v455
    %568 = vmatpush.bf16.msra.mxu0 %v454
    %569 = vmatpush.bf16.msra.mxu0 %v453
    %570 = vmatpush.bf16.msra.mxu0 %v452
    %571 = vmatpush.bf16.msra.mxu0 %v451
    %572 = vmatmul.bf16.gmra.mxu0 %v316
    %v573 = vpop.f32.mrf.mxu0
    %v574 = vadd.f32 %v485, %v573
    %v575 = vpop.f32.mrf.mxu0
    %v576 = vadd.f32 %v487, %v575
    %577 = vmatmul.bf16.gmra.mxu0 %v318
    %v578 = vpop.f32.mrf.mxu0
    %v579 = vadd.f32 %v490, %v578
    %v580 = vpop.f32.mrf.mxu0
    %v581 = vadd.f32 %v492, %v580
    %582 = vmatmul.bf16.gmra.mxu0 %v320
    %v583 = vpop.f32.mrf.mxu0
    %v584 = vadd.f32 %v495, %v583
    %v585 = vpop.f32.mrf.mxu0
    %v586 = vadd.f32 %v497, %v585
    %587 = vmatmul.bf16.gmra.mxu0 %v322
    %v588 = vpop.f32.mrf.mxu0
    %v589 = vadd.f32 %v500, %v588
    %v590 = vpop.f32.mrf.mxu0
    %v591 = vadd.f32 %v502, %v590
    %592 = vmatmul.bf16.gmra.mxu0 %v324
    %v593 = vpop.f32.mrf.mxu0
    %v594 = vadd.f32 %v505, %v593
    %v595 = vpop.f32.mrf.mxu0
    %v596 = vadd.f32 %v507, %v595
    %597 = vmatmul.bf16.gmra.mxu0 %v326
    %v598 = vpop.f32.mrf.mxu0
    %v599 = vadd.f32 %v510, %v598
    %v600 = vpop.f32.mrf.mxu0
    %v601 = vadd.f32 %v512, %v600
    %602 = vmatmul.bf16.gmra.mxu0 %v328
    %v603 = vpop.f32.mrf.mxu0
    %v604 = vadd.f32 %v515, %v603
    %v605 = vpop.f32.mrf.mxu0
    %v606 = vadd.f32 %v517, %v605
    %607 = vmatmul.bf16.gmra.mxu0 %v330
    %v608 = vpop.f32.mrf.mxu0
    %v609 = vadd.f32 %v520, %v608
    %v610 = vpop.f32.mrf.mxu0
    %v611 = vadd.f32 %v522, %v610
    %612 = vmatmul.bf16.gmra.mxu0 %v332
    %v613 = vpop.f32.mrf.mxu0
    %v614 = vadd.f32 %v525, %v613
    %v615 = vpop.f32.mrf.mxu0
    %v616 = vadd.f32 %v527, %v615
    %617 = vmatmul.bf16.gmra.mxu0 %v334
    %v618 = vpop.f32.mrf.mxu0
    %v619 = vadd.f32 %v530, %v618
    %v620 = vpop.f32.mrf.mxu0
    %v621 = vadd.f32 %v532, %v620
    %622 = vmatmul.bf16.gmra.mxu0 %v336
    %v623 = vpop.f32.mrf.mxu0
    %v624 = vadd.f32 %v535, %v623
    %v625 = vpop.f32.mrf.mxu0
    %v626 = vadd.f32 %v537, %v625
    %627 = vmatmul.bf16.gmra.mxu0 %v338
    %v628 = vpop.f32.mrf.mxu0
    %v629 = vadd.f32 %v540, %v628
    %v630 = vpop.f32.mrf.mxu0
    %v631 = vadd.f32 %v542, %v630
    %632 = vmatmul.bf16.gmra.mxu0 %v340
    %v633 = vpop.f32.mrf.mxu0
    %v634 = vadd.f32 %v545, %v633
    %v635 = vpop.f32.mrf.mxu0
    %v636 = vadd.f32 %v547, %v635
    %637 = vmatmul.bf16.gmra.mxu0 %v342
    %v638 = vpop.f32.mrf.mxu0
    %v639 = vadd.f32 %v550, %v638
    %v640 = vpop.f32.mrf.mxu0
    %v641 = vadd.f32 %v552, %v640
    %642 = vmatmul.bf16.gmra.mxu0 %v344
    %v643 = vpop.f32.mrf.mxu0
    %v644 = vadd.f32 %v555, %v643
    %v645 = vpop.f32.mrf.mxu0
    %v646 = vadd.f32 %v557, %v645
    %647 = vmatmul.bf16.gmra.mxu0 %v346
    %v648 = vpop.f32.mrf.mxu0
    %v649 = vadd.f32 %v560, %v648
    %v650 = vpop.f32.mrf.mxu0
    %v651 = vadd.f32 %v562, %v650
    %652 = vdwg.mxu0
    %v653 = vadd.f32 %v123, %v574
    %v654 = vadd.f32 %v124, %v576
    %v655 = vadd.f32 %v125, %v579
    %v656 = vadd.f32 %v126, %v581
    %v657 = vadd.f32 %v127, %v584
    %v658 = vadd.f32 %v128, %v586
    %v659 = vadd.f32 %v129, %v589
    %v660 = vadd.f32 %v130, %v591
    %v661 = vadd.f32 %v131, %v594
    %v662 = vadd.f32 %v132, %v596
    %v663 = vadd.f32 %v133, %v599
    %v664 = vadd.f32 %v134, %v601
    %v665 = vadd.f32 %v135, %v604
    %v666 = vadd.f32 %v136, %v606
    %v667 = vadd.f32 %v137, %v609
    %v668 = vadd.f32 %v138, %v611
    %v669 = vadd.f32 %v139, %v614
    %v670 = vadd.f32 %v140, %v616
    %v671 = vadd.f32 %v141, %v619
    %v672 = vadd.f32 %v142, %v621
    %v673 = vadd.f32 %v143, %v624
    %v674 = vadd.f32 %v144, %v626
    %v675 = vadd.f32 %v145, %v629
    %v676 = vadd.f32 %v146, %v631
    %v677 = vadd.f32 %v147, %v634
    %v678 = vadd.f32 %v148, %v636
    %v679 = vadd.f32 %v149, %v639
    %v680 = vadd.f32 %v150, %v641
    %v681 = vadd.f32 %v151, %v644
    %v682 = vadd.f32 %v152, %v646
    %v683 = vadd.f32 %v153, %v649
    %v684 = vadd.f32 %v154, %v651
    %685 = vst [vmem:[#allocation2] sm:$0xff] %v653
    %686 = vst [vmem:[#allocation2 + $0x8] sm:$0xff] %v654
    %687 = vst [vmem:[#allocation2 + $0x10] sm:$0xff] %v655
    %688 = vst [vmem:[#allocation2 + $0x18] sm:$0xff] %v656
    %689 = vst [vmem:[#allocation2 + $0x20] sm:$0xff] %v657
    %690 = vst [vmem:[#allocation2 + $0x28] sm:$0xff] %v658
    %691 = vst [vmem:[#allocation2 + $0x30] sm:$0xff] %v659
    %692 = vst [vmem:[#allocation2 + $0x38] sm:$0xff] %v660
    %693 = vst [vmem:[#allocation2 + $0x40] sm:$0xff] %v661
    %694 = vst [vmem:[#allocation2 + $0x48] sm:$0xff] %v662
    %695 = vst [vmem:[#allocation2 + $0x50] sm:$0xff] %v663
    %696 = vst [vmem:[#allocation2 + $0x58] sm:$0xff] %v664
    %697 = vst [vmem:[#allocation2 + $0x60] sm:$0xff] %v665
    %698 = vst [vmem:[#allocation2 + $0x68] sm:$0xff] %v666
    %699 = vst [vmem:[#allocation2 + $0x70] sm:$0xff] %v667
    %700 = vst [vmem:[#allocation2 + $0x78] sm:$0xff] %v668
    %701 = vst [vmem:[#allocation2 + $0x80] sm:$0xff] %v669
    %702 = vst [vmem:[#allocation2 + $0x88] sm:$0xff] %v670
    %703 = vst [vmem:[#allocation2 + $0x90] sm:$0xff] %v671
    %704 = vst [vmem:[#allocation2 + $0x98] sm:$0xff] %v672
    %705 = vst [vmem:[#allocation2 + $0xa0] sm:$0xff] %v673
    %706 = vst [vmem:[#allocation2 + $0xa8] sm:$0xff] %v674
    %707 = vst [vmem:[#allocation2 + $0xb0] sm:$0xff] %v675
    %708 = vst [vmem:[#allocation2 + $0xb8] sm:$0xff] %v676
    %709 = vst [vmem:[#allocation2 + $0xc0] sm:$0xff] %v677
    %710 = vst [vmem:[#allocation2 + $0xc8] sm:$0xff] %v678
    %711 = vst [vmem:[#allocation2 + $0xd0] sm:$0xff] %v679
    %712 = vst [vmem:[#allocation2 + $0xd8] sm:$0xff] %v680
    %713 = vst [vmem:[#allocation2 + $0xe0] sm:$0xff] %v681
    %714 = vst [vmem:[#allocation2 + $0xe8] sm:$0xff] %v682
    %715 = vst [vmem:[#allocation2 + $0xf0] sm:$0xff] %v683
    %716 = vst [vmem:[#allocation2 + $0xf8] sm:$0xff] %v684
    // Predicated region
    $region46: #{tpu_custom_call.1} parent=1 // pred_check
      %p717 = pneg %p87
    $region47: #{tpu_custom_call.1} parent=1 // pred_check_branch
      %719 = sbr.rel (%p717) target = $region49
    $region48: #{tpu_custom_call.1} parent=1 // pred_region
      %v720 = vld [vmem:[#allocation3] sm:$0xf]
      %v721 = vld [vmem:[#allocation3 + $0x4] sm:$0xf]
      %v722 = vld [vmem:[#allocation3 + $0x8] sm:$0xf]
      %v723 = vld [vmem:[#allocation3 + $0xc] sm:$0xf]
      %v724 = vld [vmem:[#allocation3 + $0x10] sm:$0xf]
      %v725 = vld [vmem:[#allocation3 + $0x14] sm:$0xf]
      %v726 = vld [vmem:[#allocation3 + $0x18] sm:$0xf]
      %v727 = vld [vmem:[#allocation3 + $0x1c] sm:$0xf]
      %v728 = vld [vmem:[#allocation3 + $0x20] sm:$0xf]
      %v729 = vld [vmem:[#allocation3 + $0x24] sm:$0xf]
      %v730 = vld [vmem:[#allocation3 + $0x28] sm:$0xf]
      %v731 = vld [vmem:[#allocation3 + $0x2c] sm:$0xf]
      %v732 = vld [vmem:[#allocation3 + $0x30] sm:$0xf]
      %v733 = vld [vmem:[#allocation3 + $0x34] sm:$0xf]
      %v734 = vld [vmem:[#allocation3 + $0x38] sm:$0xf]
      %v735 = vld [vmem:[#allocation3 + $0x3c] sm:$0xf]
      %v736 = vld [vmem:[#allocation3 + $0x40] sm:$0xf]
      %v737 = vld [vmem:[#allocation3 + $0x44] sm:$0xf]
      %v738 = vld [vmem:[#allocation3 + $0x48] sm:$0xf]
      %v739 = vld [vmem:[#allocation3 + $0x4c] sm:$0xf]
      %v740 = vld [vmem:[#allocation3 + $0x50] sm:$0xf]
      %v741 = vld [vmem:[#allocation3 + $0x54] sm:$0xf]
      %v742 = vld [vmem:[#allocation3 + $0x58] sm:$0xf]
      %v743 = vld [vmem:[#allocation3 + $0x5c] sm:$0xf]
      %v744 = vld [vmem:[#allocation3 + $0x60] sm:$0xf]
      %v745 = vld [vmem:[#allocation3 + $0x64] sm:$0xf]
      %v746 = vld [vmem:[#allocation3 + $0x68] sm:$0xf]
      %v747 = vld [vmem:[#allocation3 + $0x6c] sm:$0xf]
      %v748 = vld [vmem:[#allocation3 + $0x70] sm:$0xf]
      %v749 = vld [vmem:[#allocation3 + $0x74] sm:$0xf]
      %v750 = vld [vmem:[#allocation3 + $0x78] sm:$0xf]
      %v751 = vld [vmem:[#allocation3 + $0x7c] sm:$0xf]
      %v752 = vld [vmem:[#allocation8] sm:$0xf]
      %v753 = vld [vmem:[#allocation8 + $0x4] sm:$0xf]
      %v754 = vld [vmem:[#allocation8 + $0x8] sm:$0xf]
      %v755 = vld [vmem:[#allocation8 + $0xc] sm:$0xf]
      %v756 = vld [vmem:[#allocation8 + $0x10] sm:$0xf]
      %v757 = vld [vmem:[#allocation8 + $0x14] sm:$0xf]
      %v758 = vld [vmem:[#allocation8 + $0x18] sm:$0xf]
      %v759 = vld [vmem:[#allocation8 + $0x1c] sm:$0xf]
      %v760 = vld [vmem:[#allocation8 + $0x20] sm:$0xf]
      %v761 = vld [vmem:[#allocation8 + $0x24] sm:$0xf]
      %v762 = vld [vmem:[#allocation8 + $0x28] sm:$0xf]
      %v763 = vld [vmem:[#allocation8 + $0x2c] sm:$0xf]
      %v764 = vld [vmem:[#allocation8 + $0x30] sm:$0xf]
      %v765 = vld [vmem:[#allocation8 + $0x34] sm:$0xf]
      %v766 = vld [vmem:[#allocation8 + $0x38] sm:$0xf]
      %v767 = vld [vmem:[#allocation8 + $0x3c] sm:$0xf]
      %v768 = vld [vmem:[#allocation2] sm:$0xff]
      %v769 = vld [vmem:[#allocation2 + $0x8] sm:$0xff]
      %v770 = vld [vmem:[#allocation2 + $0x10] sm:$0xff]
      %v771 = vld [vmem:[#allocation2 + $0x18] sm:$0xff]
      %v772 = vld [vmem:[#allocation2 + $0x20] sm:$0xff]
      %v773 = vld [vmem:[#allocation2 + $0x28] sm:$0xff]
      %v774 = vld [vmem:[#allocation2 + $0x30] sm:$0xff]
      %v775 = vld [vmem:[#allocation2 + $0x38] sm:$0xff]
      %v776 = vld [vmem:[#allocation2 + $0x40] sm:$0xff]
      %v777 = vld [vmem:[#allocation2 + $0x48] sm:$0xff]
      %v778 = vld [vmem:[#allocation2 + $0x50] sm:$0xff]
      %v779 = vld [vmem:[#allocation2 + $0x58] sm:$0xff]
      %v780 = vld [vmem:[#allocation2 + $0x60] sm:$0xff]
      %v781 = vld [vmem:[#allocation2 + $0x68] sm:$0xff]
      %v782 = vld [vmem:[#allocation2 + $0x70] sm:$0xff]
      %v783 = vld [vmem:[#allocation2 + $0x78] sm:$0xff]
      %v784 = vld [vmem:[#allocation2 + $0x80] sm:$0xff]
      %v785 = vld [vmem:[#allocation2 + $0x88] sm:$0xff]
      %v786 = vld [vmem:[#allocation2 + $0x90] sm:$0xff]
      %v787 = vld [vmem:[#allocation2 + $0x98] sm:$0xff]
      %v788 = vld [vmem:[#allocation2 + $0xa0] sm:$0xff]
      %v789 = vld [vmem:[#allocation2 + $0xa8] sm:$0xff]
      %v790 = vld [vmem:[#allocation2 + $0xb0] sm:$0xff]
      %v791 = vld [vmem:[#allocation2 + $0xb8] sm:$0xff]
      %v792 = vld [vmem:[#allocation2 + $0xc0] sm:$0xff]
      %v793 = vld [vmem:[#allocation2 + $0xc8] sm:$0xff]
      %v794 = vld [vmem:[#allocation2 + $0xd0] sm:$0xff]
      %v795 = vld [vmem:[#allocation2 + $0xd8] sm:$0xff]
      %v796 = vld [vmem:[#allocation2 + $0xe0] sm:$0xff]
      %v797 = vld [vmem:[#allocation2 + $0xe8] sm:$0xff]
      %v798 = vld [vmem:[#allocation2 + $0xf0] sm:$0xff]
      %v799 = vld [vmem:[#allocation2 + $0xf8] sm:$0xff]
      %v800 = vpack.c.bf16 %v769, %v768
      %v801 = vpack.c.bf16 %v771, %v770
      %v802 = vpack.c.bf16 %v773, %v772
      %v803 = vpack.c.bf16 %v775, %v774
      %v804 = vpack.c.bf16 %v777, %v776
      %v805 = vpack.c.bf16 %v779, %v778
      %v806 = vpack.c.bf16 %v781, %v780
      %v807 = vpack.c.bf16 %v783, %v782
      %v808 = vpack.c.bf16 %v785, %v784
      %v809 = vpack.c.bf16 %v787, %v786
      %v810 = vpack.c.bf16 %v789, %v788
      %v811 = vpack.c.bf16 %v791, %v790
      %v812 = vpack.c.bf16 %v793, %v792
      %v813 = vpack.c.bf16 %v795, %v794
      %v814 = vpack.c.bf16 %v797, %v796
      %v815 = vpack.c.bf16 %v799, %v798
      %v816 = vld [vmem:[#allocation9] sm:$0xf]
      %v817 = vld [vmem:[#allocation9 + $0x4] sm:$0xf]
      %v818 = vld [vmem:[#allocation9 + $0x8] sm:$0xf]
      %v819 = vld [vmem:[#allocation9 + $0xc] sm:$0xf]
      %v820 = vld [vmem:[#allocation9 + $0x10] sm:$0xf]
      %v821 = vld [vmem:[#allocation9 + $0x14] sm:$0xf]
      %v822 = vld [vmem:[#allocation9 + $0x18] sm:$0xf]
      %v823 = vld [vmem:[#allocation9 + $0x1c] sm:$0xf]
      %v824 = vld [vmem:[#allocation9 + $0x20] sm:$0xf]
      %v825 = vld [vmem:[#allocation9 + $0x24] sm:$0xf]
      %v826 = vld [vmem:[#allocation9 + $0x28] sm:$0xf]
      %v827 = vld [vmem:[#allocation9 + $0x2c] sm:$0xf]
      %v828 = vld [vmem:[#allocation9 + $0x30] sm:$0xf]
      %v829 = vld [vmem:[#allocation9 + $0x34] sm:$0xf]
      %v830 = vld [vmem:[#allocation9 + $0x38] sm:$0xf]
      %v831 = vld [vmem:[#allocation9 + $0x3c] sm:$0xf]
      %v848 = vunpack.c.l.b16 %v816
      %v849 = vunpack.c.l.b16 %v817
      %v850 = vunpack.c.l.b16 %v818
      %v851 = vunpack.c.l.b16 %v819
      %v852 = vunpack.c.l.b16 %v820
      %v853 = vunpack.c.l.b16 %v821
      %v854 = vunpack.c.l.b16 %v822
      %v855 = vunpack.c.l.b16 %v823
      %v856 = vunpack.c.l.b16 %v824
      %v857 = vunpack.c.l.b16 %v825
      %v858 = vunpack.c.l.b16 %v826
      %v859 = vunpack.c.l.b16 %v827
      %v860 = vunpack.c.l.b16 %v828
      %v861 = vunpack.c.l.b16 %v829
      %v862 = vunpack.c.l.b16 %v830
      %v863 = vunpack.c.l.b16 %v831
      %v864 = vpack.c.b16 %v849, %v848
      %v865 = vpack.c.b16 %v851, %v850
      %v866 = vpack.c.b16 %v853, %v852
      %v867 = vpack.c.b16 %v855, %v854
      %v868 = vpack.c.b16 %v857, %v856
      %v869 = vpack.c.b16 %v859, %v858
      %v870 = vpack.c.b16 %v861, %v860
      %v871 = vpack.c.b16 %v863, %v862
      %880 = vmatpush.bf16.msra.mxu0 %v871
      %881 = vmatpush.bf16.msra.mxu0 %v870
      %882 = vmatpush.bf16.msra.mxu0 %v869
      %883 = vmatpush.bf16.msra.mxu0 %v868
      %884 = vmatpush.bf16.msra.mxu0 %v867
      %885 = vmatpush.bf16.msra.mxu0 %v866
      %886 = vmatpush.bf16.msra.mxu0 %v865
      %887 = vmatpush.bf16.msra.mxu0 %v864
      %888 = vmatmul.bf16.gmra.mxu0 %v800
      %v889 = vpop.f32.mrf.mxu0
      %v890 = vadd.f32 0.0, %v889
      %v891 = vpop.f32.mrf.mxu0
      %v892 = vadd.f32 0.0, %v891
      %893 = vmatmul.bf16.gmra.mxu0 %v801
      %v894 = vpop.f32.mrf.mxu0
      %v895 = vadd.f32 0.0, %v894
      %v896 = vpop.f32.mrf.mxu0
      %v897 = vadd.f32 0.0, %v896
      %898 = vmatmul.bf16.gmra.mxu0 %v802
      %v899 = vpop.f32.mrf.mxu0
      %v900 = vadd.f32 0.0, %v899
      %v901 = vpop.f32.mrf.mxu0
      %v902 = vadd.f32 0.0, %v901
      %903 = vmatmul.bf16.gmra.mxu0 %v803
      %v904 = vpop.f32.mrf.mxu0
      %v905 = vadd.f32 0.0, %v904
      %v906 = vpop.f32.mrf.mxu0
      %v907 = vadd.f32 0.0, %v906
      %908 = vmatmul.bf16.gmra.mxu0 %v804
      %v909 = vpop.f32.mrf.mxu0
      %v910 = vadd.f32 0.0, %v909
      %v911 = vpop.f32.mrf.mxu0
      %v912 = vadd.f32 0.0, %v911
      %913 = vmatmul.bf16.gmra.mxu0 %v805
      %v914 = vpop.f32.mrf.mxu0
      %v915 = vadd.f32 0.0, %v914
      %v916 = vpop.f32.mrf.mxu0
      %v917 = vadd.f32 0.0, %v916
      %918 = vmatmul.bf16.gmra.mxu0 %v806
      %v919 = vpop.f32.mrf.mxu0
      %v920 = vadd.f32 0.0, %v919
      %v921 = vpop.f32.mrf.mxu0
      %v922 = vadd.f32 0.0, %v921
      %923 = vmatmul.bf16.gmra.mxu0 %v807
      %v924 = vpop.f32.mrf.mxu0
      %v925 = vadd.f32 0.0, %v924
      %v926 = vpop.f32.mrf.mxu0
      %v927 = vadd.f32 0.0, %v926
      %928 = vmatmul.bf16.gmra.mxu0 %v808
      %v929 = vpop.f32.mrf.mxu0
      %v930 = vadd.f32 0.0, %v929
      %v931 = vpop.f32.mrf.mxu0
      %v932 = vadd.f32 0.0, %v931
      %933 = vmatmul.bf16.gmra.mxu0 %v809
      %v934 = vpop.f32.mrf.mxu0
      %v935 = vadd.f32 0.0, %v934
      %v936 = vpop.f32.mrf.mxu0
      %v937 = vadd.f32 0.0, %v936
      %938 = vmatmul.bf16.gmra.mxu0 %v810
      %v939 = vpop.f32.mrf.mxu0
      %v940 = vadd.f32 0.0, %v939
      %v941 = vpop.f32.mrf.mxu0
      %v942 = vadd.f32 0.0, %v941
      %943 = vmatmul.bf16.gmra.mxu0 %v811
      %v944 = vpop.f32.mrf.mxu0
      %v945 = vadd.f32 0.0, %v944
      %v946 = vpop.f32.mrf.mxu0
      %v947 = vadd.f32 0.0, %v946
      %948 = vmatmul.bf16.gmra.mxu0 %v812
      %v949 = vpop.f32.mrf.mxu0
      %v950 = vadd.f32 0.0, %v949
      %v951 = vpop.f32.mrf.mxu0
      %v952 = vadd.f32 0.0, %v951
      %953 = vmatmul.bf16.gmra.mxu0 %v813
      %v954 = vpop.f32.mrf.mxu0
      %v955 = vadd.f32 0.0, %v954
      %v956 = vpop.f32.mrf.mxu0
      %v957 = vadd.f32 0.0, %v956
      %958 = vmatmul.bf16.gmra.mxu0 %v814
      %v959 = vpop.f32.mrf.mxu0
      %v960 = vadd.f32 0.0, %v959
      %v961 = vpop.f32.mrf.mxu0
      %v962 = vadd.f32 0.0, %v961
      %963 = vmatmul.bf16.gmra.mxu0 %v815
      %v964 = vpop.f32.mrf.mxu0
      %v965 = vadd.f32 0.0, %v964
      %v966 = vpop.f32.mrf.mxu0
      %v967 = vadd.f32 0.0, %v966
      %968 = vdwg.mxu0
      %v969 = vld [vmem:[%s3] sm:$0xff]
      %v970 = vld [vmem:[%s3 + $0x8] sm:$0xff]
      %v971 = vld [vmem:[%s3 + $0x10] sm:$0xff]
      %v972 = vld [vmem:[%s3 + $0x18] sm:$0xff]
      %v973 = vld [vmem:[%s3 + $0x20] sm:$0xff]
      %v974 = vld [vmem:[%s3 + $0x28] sm:$0xff]
      %v975 = vld [vmem:[%s3 + $0x30] sm:$0xff]
      %v976 = vld [vmem:[%s3 + $0x38] sm:$0xff]
      %v977 = vld [vmem:[%s3 + $0x40] sm:$0xff]
      %v978 = vld [vmem:[%s3 + $0x48] sm:$0xff]
      %v979 = vld [vmem:[%s3 + $0x50] sm:$0xff]
      %v980 = vld [vmem:[%s3 + $0x58] sm:$0xff]
      %v981 = vld [vmem:[%s3 + $0x60] sm:$0xff]
      %v982 = vld [vmem:[%s3 + $0x68] sm:$0xff]
      %v983 = vld [vmem:[%s3 + $0x70] sm:$0xff]
      %v984 = vld [vmem:[%s3 + $0x78] sm:$0xff]
      %v985 = vld [vmem:[%s3 + $0x80] sm:$0xff]
      %v986 = vld [vmem:[%s3 + $0x88] sm:$0xff]
      %v987 = vld [vmem:[%s3 + $0x90] sm:$0xff]
      %v988 = vld [vmem:[%s3 + $0x98] sm:$0xff]
      %v989 = vld [vmem:[%s3 + $0xa0] sm:$0xff]
      %v990 = vld [vmem:[%s3 + $0xa8] sm:$0xff]
      %v991 = vld [vmem:[%s3 + $0xb0] sm:$0xff]
      %v992 = vld [vmem:[%s3 + $0xb8] sm:$0xff]
      %v993 = vld [vmem:[%s3 + $0xc0] sm:$0xff]
      %v994 = vld [vmem:[%s3 + $0xc8] sm:$0xff]
      %v995 = vld [vmem:[%s3 + $0xd0] sm:$0xff]
      %v996 = vld [vmem:[%s3 + $0xd8] sm:$0xff]
      %v997 = vld [vmem:[%s3 + $0xe0] sm:$0xff]
      %v998 = vld [vmem:[%s3 + $0xe8] sm:$0xff]
      %v999 = vld [vmem:[%s3 + $0xf0] sm:$0xff]
      %v1000 = vld [vmem:[%s3 + $0xf8] sm:$0xff]
      %1002 = vset.pattern.permute.xlu0 0
      %1003 = vperm.xlu0 %1002, %v969
      %v1004 = vpop.permute.xlu0 %1003
      %1007 = vset.pattern.permute.xlu0 0
      %1008 = vperm.xlu0 %1007, %v970
      %v1009 = vpop.permute.xlu0 %1008
      %1012 = vset.pattern.permute.xlu0 0
      %1013 = vperm.xlu0 %1012, %v971
      %v1014 = vpop.permute.xlu0 %1013
      %1017 = vset.pattern.permute.xlu0 0
      %1018 = vperm.xlu0 %1017, %v972
      %v1019 = vpop.permute.xlu0 %1018
      %1022 = vset.pattern.permute.xlu0 0
      %1023 = vperm.xlu0 %1022, %v973
      %v1024 = vpop.permute.xlu0 %1023
      %1027 = vset.pattern.permute.xlu0 0
      %1028 = vperm.xlu0 %1027, %v974
      %v1029 = vpop.permute.xlu0 %1028
      %1032 = vset.pattern.permute.xlu0 0
      %1033 = vperm.xlu0 %1032, %v975
      %v1034 = vpop.permute.xlu0 %1033
      %1037 = vset.pattern.permute.xlu0 0
      %1038 = vperm.xlu0 %1037, %v976
      %v1039 = vpop.permute.xlu0 %1038
      %1042 = vset.pattern.permute.xlu0 0
      %1043 = vperm.xlu0 %1042, %v977
      %v1044 = vpop.permute.xlu0 %1043
      %1047 = vset.pattern.permute.xlu0 0
      %1048 = vperm.xlu0 %1047, %v978
      %v1049 = vpop.permute.xlu0 %1048
      %1052 = vset.pattern.permute.xlu0 0
      %1053 = vperm.xlu0 %1052, %v979
      %v1054 = vpop.permute.xlu0 %1053
      %1057 = vset.pattern.permute.xlu0 0
      %1058 = vperm.xlu0 %1057, %v980
      %v1059 = vpop.permute.xlu0 %1058
      %1062 = vset.pattern.permute.xlu0 0
      %1063 = vperm.xlu0 %1062, %v981
      %v1064 = vpop.permute.xlu0 %1063
      %1067 = vset.pattern.permute.xlu0 0
      %1068 = vperm.xlu0 %1067, %v982
      %v1069 = vpop.permute.xlu0 %1068
      %1072 = vset.pattern.permute.xlu0 0
      %1073 = vperm.xlu0 %1072, %v983
      %v1074 = vpop.permute.xlu0 %1073
      %1077 = vset.pattern.permute.xlu0 0
      %1078 = vperm.xlu0 %1077, %v984
      %v1079 = vpop.permute.xlu0 %1078
      %1082 = vset.pattern.permute.xlu0 0
      %1083 = vperm.xlu0 %1082, %v985
      %v1084 = vpop.permute.xlu0 %1083
      %1087 = vset.pattern.permute.xlu0 0
      %1088 = vperm.xlu0 %1087, %v986
      %v1089 = vpop.permute.xlu0 %1088
      %1092 = vset.pattern.permute.xlu0 0
      %1093 = vperm.xlu0 %1092, %v987
      %v1094 = vpop.permute.xlu0 %1093
      %1097 = vset.pattern.permute.xlu0 0
      %1098 = vperm.xlu0 %1097, %v988
      %v1099 = vpop.permute.xlu0 %1098
      %1102 = vset.pattern.permute.xlu0 0
      %1103 = vperm.xlu0 %1102, %v989
      %v1104 = vpop.permute.xlu0 %1103
      %1107 = vset.pattern.permute.xlu0 0
      %1108 = vperm.xlu0 %1107, %v990
      %v1109 = vpop.permute.xlu0 %1108
      %1112 = vset.pattern.permute.xlu0 0
      %1113 = vperm.xlu0 %1112, %v991
      %v1114 = vpop.permute.xlu0 %1113
      %1117 = vset.pattern.permute.xlu0 0
      %1118 = vperm.xlu0 %1117, %v992
      %v1119 = vpop.permute.xlu0 %1118
      %1122 = vset.pattern.permute.xlu0 0
      %1123 = vperm.xlu0 %1122, %v993
      %v1124 = vpop.permute.xlu0 %1123
      %1127 = vset.pattern.permute.xlu0 0
      %1128 = vperm.xlu0 %1127, %v994
      %v1129 = vpop.permute.xlu0 %1128
      %1132 = vset.pattern.permute.xlu0 0
      %1133 = vperm.xlu0 %1132, %v995
      %v1134 = vpop.permute.xlu0 %1133
      %1137 = vset.pattern.permute.xlu0 0
      %1138 = vperm.xlu0 %1137, %v996
      %v1139 = vpop.permute.xlu0 %1138
      %1142 = vset.pattern.permute.xlu0 0
      %1143 = vperm.xlu0 %1142, %v997
      %v1144 = vpop.permute.xlu0 %1143
      %1147 = vset.pattern.permute.xlu0 0
      %1148 = vperm.xlu0 %1147, %v998
      %v1149 = vpop.permute.xlu0 %1148
      %1152 = vset.pattern.permute.xlu0 0
      %1153 = vperm.xlu0 %1152, %v999
      %v1154 = vpop.permute.xlu0 %1153
      %1157 = vset.pattern.permute.xlu0 0
      %1158 = vperm.xlu0 %1157, %v1000
      %v1159 = vpop.permute.xlu0 %1158
      %v1161 = vmul.f32 %v1004, %v890
      %v1162 = vmul.f32 %v1009, %v892
      %v1163 = vmul.f32 %v1014, %v895
      %v1164 = vmul.f32 %v1019, %v897
      %v1165 = vmul.f32 %v1024, %v900
      %v1166 = vmul.f32 %v1029, %v902
      %v1167 = vmul.f32 %v1034, %v905
      %v1168 = vmul.f32 %v1039, %v907
      %v1169 = vmul.f32 %v1044, %v910
      %v1170 = vmul.f32 %v1049, %v912
      %v1171 = vmul.f32 %v1054, %v915
      %v1172 = vmul.f32 %v1059, %v917
      %v1173 = vmul.f32 %v1064, %v920
      %v1174 = vmul.f32 %v1069, %v922
      %v1175 = vmul.f32 %v1074, %v925
      %v1176 = vmul.f32 %v1079, %v927
      %v1177 = vmul.f32 %v1084, %v930
      %v1178 = vmul.f32 %v1089, %v932
      %v1179 = vmul.f32 %v1094, %v935
      %v1180 = vmul.f32 %v1099, %v937
      %v1181 = vmul.f32 %v1104, %v940
      %v1182 = vmul.f32 %v1109, %v942
      %v1183 = vmul.f32 %v1114, %v945
      %v1184 = vmul.f32 %v1119, %v947
      %v1185 = vmul.f32 %v1124, %v950
      %v1186 = vmul.f32 %v1129, %v952
      %v1187 = vmul.f32 %v1134, %v955
      %v1188 = vmul.f32 %v1139, %v957
      %v1189 = vmul.f32 %v1144, %v960
      %v1190 = vmul.f32 %v1149, %v962
      %v1191 = vmul.f32 %v1154, %v965
      %v1192 = vmul.f32 %v1159, %v967
      %v1225 = vunpack.c.l.b16 %v720
      %v1226 = vunpack.c.l.b16 %v721
      %v1227 = vunpack.c.l.b16 %v722
      %v1228 = vunpack.c.l.b16 %v723
      %v1229 = vunpack.c.l.b16 %v724
      %v1230 = vunpack.c.l.b16 %v725
      %v1231 = vunpack.c.l.b16 %v726
      %v1232 = vunpack.c.l.b16 %v727
      %v1233 = vunpack.c.l.b16 %v728
      %v1234 = vunpack.c.l.b16 %v729
      %v1235 = vunpack.c.l.b16 %v730
      %v1236 = vunpack.c.l.b16 %v731
      %v1237 = vunpack.c.l.b16 %v732
      %v1238 = vunpack.c.l.b16 %v733
      %v1239 = vunpack.c.l.b16 %v734
      %v1240 = vunpack.c.l.b16 %v735
      %v1241 = vunpack.c.l.b16 %v736
      %v1242 = vunpack.c.l.b16 %v737
      %v1243 = vunpack.c.l.b16 %v738
      %v1244 = vunpack.c.l.b16 %v739
      %v1245 = vunpack.c.l.b16 %v740
      %v1246 = vunpack.c.l.b16 %v741
      %v1247 = vunpack.c.l.b16 %v742
      %v1248 = vunpack.c.l.b16 %v743
      %v1249 = vunpack.c.l.b16 %v744
      %v1250 = vunpack.c.l.b16 %v745
      %v1251 = vunpack.c.l.b16 %v746
      %v1252 = vunpack.c.l.b16 %v747
      %v1253 = vunpack.c.l.b16 %v748
      %v1254 = vunpack.c.l.b16 %v749
      %v1255 = vunpack.c.l.b16 %v750
      %v1256 = vunpack.c.l.b16 %v751
      %v1257 = vpack.c.b16 %v1226, %v1225
      %v1258 = vpack.c.b16 %v1228, %v1227
      %v1259 = vpack.c.b16 %v1230, %v1229
      %v1260 = vpack.c.b16 %v1232, %v1231
      %v1261 = vpack.c.b16 %v1234, %v1233
      %v1262 = vpack.c.b16 %v1236, %v1235
      %v1263 = vpack.c.b16 %v1238, %v1237
      %v1264 = vpack.c.b16 %v1240, %v1239
      %v1265 = vpack.c.b16 %v1242, %v1241
      %v1266 = vpack.c.b16 %v1244, %v1243
      %v1267 = vpack.c.b16 %v1246, %v1245
      %v1268 = vpack.c.b16 %v1248, %v1247
      %v1269 = vpack.c.b16 %v1250, %v1249
      %v1270 = vpack.c.b16 %v1252, %v1251
      %v1271 = vpack.c.b16 %v1254, %v1253
      %v1272 = vpack.c.b16 %v1256, %v1255
      %v1305 = vunpack.c.l.b16 %v752
      %v1306 = vunpack.c.l.b16 %v753
      %v1307 = vunpack.c.l.b16 %v754
      %v1308 = vunpack.c.l.b16 %v755
      %v1309 = vunpack.c.l.b16 %v756
      %v1310 = vunpack.c.l.b16 %v757
      %v1311 = vunpack.c.l.b16 %v758
      %v1312 = vunpack.c.l.b16 %v759
      %v1313 = vunpack.c.l.b16 %v760
      %v1314 = vunpack.c.l.b16 %v761
      %v1315 = vunpack.c.l.b16 %v762
      %v1316 = vunpack.c.l.b16 %v763
      %v1317 = vunpack.c.l.b16 %v764
      %v1318 = vunpack.c.l.b16 %v765
      %v1319 = vunpack.c.l.b16 %v766
      %v1320 = vunpack.c.l.b16 %v767
      %v1321 = vpack.c.b16 %v1306, %v1305
      %v1322 = vpack.c.b16 %v1308, %v1307
      %v1323 = vpack.c.b16 %v1310, %v1309
      %v1324 = vpack.c.b16 %v1312, %v1311
      %v1325 = vpack.c.b16 %v1314, %v1313
      %v1326 = vpack.c.b16 %v1316, %v1315
      %v1327 = vpack.c.b16 %v1318, %v1317
      %v1328 = vpack.c.b16 %v1320, %v1319
      %1337 = vmatpush.bf16.msra.mxu0 %v1328
      %1338 = vmatpush.bf16.msra.mxu0 %v1327
      %1339 = vmatpush.bf16.msra.mxu0 %v1326
      %1340 = vmatpush.bf16.msra.mxu0 %v1325
      %1341 = vmatpush.bf16.msra.mxu0 %v1324
      %1342 = vmatpush.bf16.msra.mxu0 %v1323
      %1343 = vmatpush.bf16.msra.mxu0 %v1322
      %1344 = vmatpush.bf16.msra.mxu0 %v1321
      %1345 = vmatmul.bf16.gmra.mxu0 %v1257
      %v1346 = vpop.f32.mrf.mxu0
      %v1347 = vadd.f32 %v1161, %v1346
      %v1348 = vpop.f32.mrf.mxu0
      %v1349 = vadd.f32 %v1162, %v1348
      %1350 = vmatmul.bf16.gmra.mxu0 %v1258
      %v1351 = vpop.f32.mrf.mxu0
      %v1352 = vadd.f32 %v1163, %v1351
      %v1353 = vpop.f32.mrf.mxu0
      %v1354 = vadd.f32 %v1164, %v1353
      %1355 = vmatmul.bf16.gmra.mxu0 %v1259
      %v1356 = vpop.f32.mrf.mxu0
      %v1357 = vadd.f32 %v1165, %v1356
      %v1358 = vpop.f32.mrf.mxu0
      %v1359 = vadd.f32 %v1166, %v1358
      %1360 = vmatmul.bf16.gmra.mxu0 %v1260
      %v1361 = vpop.f32.mrf.mxu0
      %v1362 = vadd.f32 %v1167, %v1361
      %v1363 = vpop.f32.mrf.mxu0
      %v1364 = vadd.f32 %v1168, %v1363
      %1365 = vmatmul.bf16.gmra.mxu0 %v1261
      %v1366 = vpop.f32.mrf.mxu0
      %v1367 = vadd.f32 %v1169, %v1366
      %v1368 = vpop.f32.mrf.mxu0
      %v1369 = vadd.f32 %v1170, %v1368
      %1370 = vmatmul.bf16.gmra.mxu0 %v1262
      %v1371 = vpop.f32.mrf.mxu0
      %v1372 = vadd.f32 %v1171, %v1371
      %v1373 = vpop.f32.mrf.mxu0
      %v1374 = vadd.f32 %v1172, %v1373
      %1375 = vmatmul.bf16.gmra.mxu0 %v1263
      %v1376 = vpop.f32.mrf.mxu0
      %v1377 = vadd.f32 %v1173, %v1376
      %v1378 = vpop.f32.mrf.mxu0
      %v1379 = vadd.f32 %v1174, %v1378
      %1380 = vmatmul.bf16.gmra.mxu0 %v1264
      %v1381 = vpop.f32.mrf.mxu0
      %v1382 = vadd.f32 %v1175, %v1381
      %v1383 = vpop.f32.mrf.mxu0
      %v1384 = vadd.f32 %v1176, %v1383
      %1385 = vmatmul.bf16.gmra.mxu0 %v1265
      %v1386 = vpop.f32.mrf.mxu0
      %v1387 = vadd.f32 %v1177, %v1386
      %v1388 = vpop.f32.mrf.mxu0
      %v1389 = vadd.f32 %v1178, %v1388
      %1390 = vmatmul.bf16.gmra.mxu0 %v1266
      %v1391 = vpop.f32.mrf.mxu0
      %v1392 = vadd.f32 %v1179, %v1391
      %v1393 = vpop.f32.mrf.mxu0
      %v1394 = vadd.f32 %v1180, %v1393
      %1395 = vmatmul.bf16.gmra.mxu0 %v1267
      %v1396 = vpop.f32.mrf.mxu0
      %v1397 = vadd.f32 %v1181, %v1396
      %v1398 = vpop.f32.mrf.mxu0
      %v1399 = vadd.f32 %v1182, %v1398
      %1400 = vmatmul.bf16.gmra.mxu0 %v1268
      %v1401 = vpop.f32.mrf.mxu0
      %v1402 = vadd.f32 %v1183, %v1401
      %v1403 = vpop.f32.mrf.mxu0
      %v1404 = vadd.f32 %v1184, %v1403
      %1405 = vmatmul.bf16.gmra.mxu0 %v1269
      %v1406 = vpop.f32.mrf.mxu0
      %v1407 = vadd.f32 %v1185, %v1406
      %v1408 = vpop.f32.mrf.mxu0
      %v1409 = vadd.f32 %v1186, %v1408
      %1410 = vmatmul.bf16.gmra.mxu0 %v1270
      %v1411 = vpop.f32.mrf.mxu0
      %v1412 = vadd.f32 %v1187, %v1411
      %v1413 = vpop.f32.mrf.mxu0
      %v1414 = vadd.f32 %v1188, %v1413
      %1415 = vmatmul.bf16.gmra.mxu0 %v1271
      %v1416 = vpop.f32.mrf.mxu0
      %v1417 = vadd.f32 %v1189, %v1416
      %v1418 = vpop.f32.mrf.mxu0
      %v1419 = vadd.f32 %v1190, %v1418
      %1420 = vmatmul.bf16.gmra.mxu0 %v1272
      %v1421 = vpop.f32.mrf.mxu0
      %v1422 = vadd.f32 %v1191, %v1421
      %v1423 = vpop.f32.mrf.mxu0
      %v1424 = vadd.f32 %v1192, %v1423
      %1425 = vdwg.mxu0
      %v1426 = vmax.f32 %v1347, 0.0
      %v1427 = vmax.f32 %v1349, 0.0
      %v1428 = vmax.f32 %v1352, 0.0
      %v1429 = vmax.f32 %v1354, 0.0
      %v1430 = vmax.f32 %v1357, 0.0
      %v1431 = vmax.f32 %v1359, 0.0
      %v1432 = vmax.f32 %v1362, 0.0
      %v1433 = vmax.f32 %v1364, 0.0
      %v1434 = vmax.f32 %v1367, 0.0
      %v1435 = vmax.f32 %v1369, 0.0
      %v1436 = vmax.f32 %v1372, 0.0
      %v1437 = vmax.f32 %v1374, 0.0
      %v1438 = vmax.f32 %v1377, 0.0
      %v1439 = vmax.f32 %v1379, 0.0
      %v1440 = vmax.f32 %v1382, 0.0
      %v1441 = vmax.f32 %v1384, 0.0
      %v1442 = vmax.f32 %v1387, 0.0
      %v1443 = vmax.f32 %v1389, 0.0
      %v1444 = vmax.f32 %v1392, 0.0
      %v1445 = vmax.f32 %v1394, 0.0
      %v1446 = vmax.f32 %v1397, 0.0
      %v1447 = vmax.f32 %v1399, 0.0
      %v1448 = vmax.f32 %v1402, 0.0
      %v1449 = vmax.f32 %v1404, 0.0
      %v1450 = vmax.f32 %v1407, 0.0
      %v1451 = vmax.f32 %v1409, 0.0
      %v1452 = vmax.f32 %v1412, 0.0
      %v1453 = vmax.f32 %v1414, 0.0
      %v1454 = vmax.f32 %v1417, 0.0
      %v1455 = vmax.f32 %v1419, 0.0
      %v1456 = vmax.f32 %v1422, 0.0
      %v1457 = vmax.f32 %v1424, 0.0
      %v1458 = vpack.c.bf16 %v1426, %v1426
      %v1459 = vpack.c.bf16 %v1427, %v1427
      %v1460 = vpack.c.bf16 %v1428, %v1428
      %v1461 = vpack.c.bf16 %v1429, %v1429
      %v1462 = vpack.c.bf16 %v1430, %v1430
      %v1463 = vpack.c.bf16 %v1431, %v1431
      %v1464 = vpack.c.bf16 %v1432, %v1432
      %v1465 = vpack.c.bf16 %v1433, %v1433
      %v1466 = vpack.c.bf16 %v1434, %v1434
      %v1467 = vpack.c.bf16 %v1435, %v1435
      %v1468 = vpack.c.bf16 %v1436, %v1436
      %v1469 = vpack.c.bf16 %v1437, %v1437
      %v1470 = vpack.c.bf16 %v1438, %v1438
      %v1471 = vpack.c.bf16 %v1439, %v1439
      %v1472 = vpack.c.bf16 %v1440, %v1440
      %v1473 = vpack.c.bf16 %v1441, %v1441
      %v1474 = vpack.c.bf16 %v1442, %v1442
      %v1475 = vpack.c.bf16 %v1443, %v1443
      %v1476 = vpack.c.bf16 %v1444, %v1444
      %v1477 = vpack.c.bf16 %v1445, %v1445
      %v1478 = vpack.c.bf16 %v1446, %v1446
      %v1479 = vpack.c.bf16 %v1447, %v1447
      %v1480 = vpack.c.bf16 %v1448, %v1448
      %v1481 = vpack.c.bf16 %v1449, %v1449
      %v1482 = vpack.c.bf16 %v1450, %v1450
      %v1483 = vpack.c.bf16 %v1451, %v1451
      %v1484 = vpack.c.bf16 %v1452, %v1452
      %v1485 = vpack.c.bf16 %v1453, %v1453
      %v1486 = vpack.c.bf16 %v1454, %v1454
      %v1487 = vpack.c.bf16 %v1455, %v1455
      %v1488 = vpack.c.bf16 %v1456, %v1456
      %v1489 = vpack.c.bf16 %v1457, %v1457
      %1490 = vst [vmem:[#allocation11] sm:$0xf] %v1458
      %1491 = vst [vmem:[#allocation11 + $0x4] sm:$0xf] %v1459
      %1492 = vst [vmem:[#allocation11 + $0x8] sm:$0xf] %v1460
      %1493 = vst [vmem:[#allocation11 + $0xc] sm:$0xf] %v1461
      %1494 = vst [vmem:[#allocation11 + $0x10] sm:$0xf] %v1462
      %1495 = vst [vmem:[#allocation11 + $0x14] sm:$0xf] %v1463
      %1496 = vst [vmem:[#allocation11 + $0x18] sm:$0xf] %v1464
      %1497 = vst [vmem:[#allocation11 + $0x1c] sm:$0xf] %v1465
      %1498 = vst [vmem:[#allocation11 + $0x20] sm:$0xf] %v1466
      %1499 = vst [vmem:[#allocation11 + $0x24] sm:$0xf] %v1467
      %1500 = vst [vmem:[#allocation11 + $0x28] sm:$0xf] %v1468
      %1501 = vst [vmem:[#allocation11 + $0x2c] sm:$0xf] %v1469
      %1502 = vst [vmem:[#allocation11 + $0x30] sm:$0xf] %v1470
      %1503 = vst [vmem:[#allocation11 + $0x34] sm:$0xf] %v1471
      %1504 = vst [vmem:[#allocation11 + $0x38] sm:$0xf] %v1472
      %1505 = vst [vmem:[#allocation11 + $0x3c] sm:$0xf] %v1473
      %1506 = vst [vmem:[#allocation11 + $0x40] sm:$0xf] %v1474
      %1507 = vst [vmem:[#allocation11 + $0x44] sm:$0xf] %v1475
      %1508 = vst [vmem:[#allocation11 + $0x48] sm:$0xf] %v1476
      %1509 = vst [vmem:[#allocation11 + $0x4c] sm:$0xf] %v1477
      %1510 = vst [vmem:[#allocation11 + $0x50] sm:$0xf] %v1478
      %1511 = vst [vmem:[#allocation11 + $0x54] sm:$0xf] %v1479
      %1512 = vst [vmem:[#allocation11 + $0x58] sm:$0xf] %v1480
      %1513 = vst [vmem:[#allocation11 + $0x5c] sm:$0xf] %v1481
      %1514 = vst [vmem:[#allocation11 + $0x60] sm:$0xf] %v1482
      %1515 = vst [vmem:[#allocation11 + $0x64] sm:$0xf] %v1483
      %1516 = vst [vmem:[#allocation11 + $0x68] sm:$0xf] %v1484
      %1517 = vst [vmem:[#allocation11 + $0x6c] sm:$0xf] %v1485
      %1518 = vst [vmem:[#allocation11 + $0x70] sm:$0xf] %v1486
      %1519 = vst [vmem:[#allocation11 + $0x74] sm:$0xf] %v1487
      %1520 = vst [vmem:[#allocation11 + $0x78] sm:$0xf] %v1488
      %1521 = vst [vmem:[#allocation11 + $0x7c] sm:$0xf] %v1489
    $region49: #{tpu_custom_call.1} parent=1 // pred_fallthru
      _
    // Predicated region
    $region50: #{tpu_custom_call.1} parent=1 // pred_check
      _
    $region51: #{tpu_custom_call.1} parent=1 // pred_check_branch
      %1523 = sbr.rel (0) target = $region53
    $region52: #{tpu_custom_call.1} parent=1 // pred_region
      %1525 = vsyncadd [#allocation5], 0
      %s1526 = sshll.u32 [#allocation11], 4
      %s1527 = int_to_ptr.vmem [resolvable:$true] %s1526
      %s1528 = sshll.u32 %s6, 4
      %s1529 = int_to_ptr.hbm [resolvable:$true] %s1528
      %1534 = dma.vmem_to_hbm [thread:$0]  %s1527, 2048, %s1529, [#allocation5], 64, 64, 4
    $region53: #{tpu_custom_call.1} parent=1 // pred_fallthru
      _
    // Predicated region
    $region54: #{tpu_custom_call.1} parent=1 // pred_check
      _
    $region55: #{tpu_custom_call.1} parent=1 // pred_check_branch
      %1536 = sbr.rel (0) target = $region57
    $region56: #{tpu_custom_call.1} parent=1 // pred_region
      %1538 = dma.done [#allocation5], 2048
    $region57: #{tpu_custom_call.1} parent=1 // pred_fallthru
      _
    %1539 = vsyncpa [#allocation4], 1
    %1540 = vsyncpa [#allocation7], 1
    %1541 = vsyncpa [#allocation10], 1
    %1542 = vsyncpa [#allocation5], 1

</llo_original>
